<compile_context>
chip_gen: v7x
topology: tpu7x:2x2x1
jax: 0.10.0
libtpu: 0.0.40
codegen_flags: <defaults>
</compile_context>

<pallas_src>
import math

import jax
import jax.numpy as jnp
from jax.experimental import pallas as pl
from jax.experimental.pallas import tpu as pltpu

_INV_SQRT2 = 1.0 / math.sqrt(2.0)


def _make_kernel(has_residual):
    """Build the kernel body; `has_residual` selects the 8- vs 9-ref signature."""

    def kernel(*refs):
        if has_residual:
            (x_ref, res_ref, gamma_ref, beta_ref,
             w1_ref, b1_ref, w2_ref, b2_ref, o_ref) = refs
        else:
            (x_ref, gamma_ref, beta_ref,
             w1_ref, b1_ref, w2_ref, b2_ref, o_ref) = refs

        x = x_ref[...].astype(jnp.float32)

        # --- LayerNorm over the last dim (eps = 1e-5, same as nn.LayerNorm) ---
        mean = jnp.mean(x, axis=-1, keepdims=True)
        var = jnp.mean((x - mean) ** 2, axis=-1, keepdims=True)
        xn = (x - mean) * jax.lax.rsqrt(var + 1e-5)
        xn = xn * gamma_ref[...] + beta_ref[...]

        # --- Linear(D -> 2D): bf16 MXU operands, f32 accumulation ---
        h = jnp.dot(xn.astype(jnp.bfloat16), w1_ref[...],
                    preferred_element_type=jnp.float32) + b1_ref[...]

        # Exact (erf) GELU, matching torch.nn.GELU() default.
        # (jax.nn.gelu(approximate=True) would use the EUP tanh path if the
        #  accuracy budget ever allows deviating from PyTorch's exact GELU.)
        h = 0.5 * h * (1.0 + jax.lax.erf(h * _INV_SQRT2))

        # Dropout: identity at inference (nn.Dropout in eval mode).
        # TODO(synk): training-mode dropout (pltpu.prng_random_bits mask) not implemented.

        # --- Linear(2D -> D): scalar gate is pre-folded into w2/b2 on the host ---
        t = jnp.dot(h.astype(jnp.bfloat16), w2_ref[...],
                    preferred_element_type=jnp.float32) + b2_ref[...]

        # --- Gated residual (gate already inside t) ---
        res = res_ref[...].astype(jnp.float32) if has_residual else x
        o_ref[...] = (res + t).astype(o_ref.dtype)

    return kernel


def gated_residual(x, params, residual=None, *, tm=256):
    """x: (N, D) tokens-by-hidden. Returns (N, D).

    D should be a multiple of 128 for lane-dense stores. tm is clamped to a
    divisor of N; with N >= 2*tm the 'parallel' row axis shards across both
    TensorCores on v7x.
    """
    N, D = x.shape
    H = 2 * D
    has_residual = residual is not None
    if has_residual:
        assert residual.shape == x.shape

    # Largest row tile <= tm that divides N.
    tm = max(1, min(tm, N))
    if N % tm != 0:
        tm = math.gcd(N, tm)

    gate = params["gate"].astype(jnp.float32)[0]
    gamma = params["gamma"].reshape(1, D).astype(jnp.float32)
    beta = params["beta"].reshape(1, D).astype(jnp.float32)
    # bf16 weight matrices (native MXU rate, half the HBM/VMEM bytes);
    # biases stay f32 (added after f32 accumulation, negligible traffic).
    w1 = params["w1"].astype(jnp.bfloat16)
    b1 = params["b1"].reshape(1, H).astype(jnp.float32)
    # Fold the scalar gate into the second linear (one-time weight transform,
    # not a per-call activation pre-scale).
    w2 = (params["w2"].astype(jnp.float32) * gate).astype(jnp.bfloat16)
    b2 = params["b2"].reshape(1, D).astype(jnp.float32) * gate

    row_spec = pl.BlockSpec((tm, D), lambda i: (i, 0))
    # Constant block index across the grid -> weights stay resident in VMEM.
    full = lambda shape: pl.BlockSpec(shape, lambda i: (0,) * len(shape))

    inputs = [x] + ([residual] if has_residual else []) + [gamma, beta, w1, b1, w2, b2]
    in_specs = (
        [row_spec] + ([row_spec] if has_residual else []) +
        [full((1, D)), full((1, D)),          # gamma, beta
         full((D, H)), full((1, H)),          # w1, b1
         full((H, D)), full((1, D))]          # w2 (gate-folded), b2 (gate-folded)
    )

    # TODO(synk): for very large D (>= ~2048) on v7x (64 MiB VMEM), tile the H
    # dimension with an f32 VMEM accumulator instead of keeping full weights resident.
    return pl.pallas_call(
        _make_kernel(has_residual),
        out_shape=jax.ShapeDtypeStruct((N, D), x.dtype),
        grid_spec=pltpu.PrefetchScalarGridSpec(
            num_scalar_prefetch=0,
            grid=(N // tm,),
            in_specs=in_specs,
            out_specs=row_spec,
        ),
        compiler_params=pltpu.CompilerParams(
            dimension_semantics=("parallel",),
            vmem_limit_bytes=64 * 1024 * 1024),
    )(*inputs)


def init_params(key, D):
    """Deterministic synthetic init matching the PyTorch module's shapes (f32)."""
    H = 2 * D
    k1, k2, k3, k4 = jax.random.split(key, 4)
    lim1 = 1.0 / math.sqrt(D)
    lim2 = 1.0 / math.sqrt(H)
    return {
        # nn.LayerNorm(D): weight=1, bias=0
        "gamma": jnp.ones((1, D), jnp.float32),
        "beta": jnp.zeros((1, D), jnp.float32),
        # Linear(D, 2D) — stored as (in, out)
        "w1": jax.random.uniform(k1, (D, H), jnp.float32, -lim1, lim1),
        "b1": jax.random.uniform(k2, (1, H), jnp.float32, -lim1, lim1),
        # Linear(2D, D)
        "w2": jax.random.uniform(k3, (H, D), jnp.float32, -lim2, lim2),
        "b2": jax.random.uniform(k4, (1, D), jnp.float32, -lim2, lim2),
        # gate = nn.Parameter(torch.ones(1))
        "gate": jnp.ones((1,), jnp.float32),
    }


def reference(x, params, residual=None):
    """Module semantics; matmul operands rounded to bf16 to mirror the kernel's
    bf16-MXU / f32-accumulate numerics (f32 elementwise throughout)."""
    if residual is None:
        residual = x
    x32 = x.astype(jnp.float32)
    mean = x32.mean(-1, keepdims=True)
    var = ((x32 - mean) ** 2).mean(-1, keepdims=True)
    xn = (x32 - mean) * jax.lax.rsqrt(var + 1e-5)
    xn = xn * params["gamma"] + params["beta"]
    w1 = params["w1"].astype(jnp.bfloat16).astype(jnp.float32)
    w2 = params["w2"].astype(jnp.bfloat16).astype(jnp.float32)
    h = xn.astype(jnp.bfloat16).astype(jnp.float32) @ w1 + params["b1"]
    h = 0.5 * h * (1.0 + jax.lax.erf(h * _INV_SQRT2))
    t = h.astype(jnp.bfloat16).astype(jnp.float32) @ w2 + params["b2"]
    return residual.astype(jnp.float32) + params["gate"][0] * t


if __name__ == "__main__":
    # batch=4, seq=128, hidden=128 -> 512 token rows, lane-dense D, 2 grid steps at tm=256
    B, S, D = 4, 128, 128
    key = jax.random.PRNGKey(0)
    kx, kr, kp = jax.random.split(key, 3)

    x3 = jax.random.normal(kx, (B, S, D), jnp.float32)
    params = init_params(kp, D)

    x = x3.reshape(B * S, D)   # flatten (B, S) -> token rows

    # Path 1: residual=None (single activation input DMA'd once)
    out = jax.block_until_ready(gated_residual(x, params))
    ref = reference(x, params)
    assert jnp.allclose(out, ref, atol=2e-3, rtol=2e-3), "mismatch (residual=None)"

    # Path 2: explicit residual + non-trivial gate (exercises the gate fold)
    params2 = dict(params, gate=jnp.full((1,), 0.5, jnp.float32))
    res = jax.random.normal(kr, (B * S, D), jnp.float32)
    out2 = jax.block_until_ready(gated_residual(x, params2, res))
    ref2 = reference(x, params2, res)
    assert jnp.allclose(out2, ref2, atol=2e-3, rtol=2e-3), "mismatch (explicit residual)"

    _ = out.reshape(B, S, D)   # restore (B, S, D) layout
    print("KERNEL_OK")
</pallas_src>

<mosaic_0001>
module attributes {stable_mosaic.version = 11 : i64} {
  func.func @kernel(%arg0: i32, %arg1: memref<256x128xf32, #tpu.memory_space<vmem>>, %arg2: memref<1x128xf32, #tpu.memory_space<vmem>>, %arg3: memref<1x128xf32, #tpu.memory_space<vmem>>, %arg4: memref<128x256xbf16, #tpu.memory_space<vmem>>, %arg5: memref<1x256xf32, #tpu.memory_space<vmem>>, %arg6: memref<256x128xbf16, #tpu.memory_space<vmem>>, %arg7: memref<1x128xf32, #tpu.memory_space<vmem>>, %arg8: memref<256x128xf32, #tpu.memory_space<vmem>>) attributes {dimension_semantics = [#tpu.dimension_semantics<parallel>], iteration_bounds = array<i64: 2>, scalar_prefetch = 0 : i64, scratch_operands = 0 : i64, tpu.core_type = #tpu.core_type<tc>, window_params = [{transform_indices = @transform_0, window_bounds = array<i64: 256, 128>}, {pipeline_mode = #tpu.pipeline_mode<synchronous>, transform_indices = @transform_1, window_bounds = array<i64: 1, 128>}, {pipeline_mode = #tpu.pipeline_mode<synchronous>, transform_indices = @transform_2, window_bounds = array<i64: 1, 128>}, {pipeline_mode = #tpu.pipeline_mode<synchronous>, transform_indices = @transform_3, window_bounds = array<i64: 128, 256>}, {pipeline_mode = #tpu.pipeline_mode<synchronous>, transform_indices = @transform_4, window_bounds = array<i64: 1, 256>}, {pipeline_mode = #tpu.pipeline_mode<synchronous>, transform_indices = @transform_5, window_bounds = array<i64: 256, 128>}, {pipeline_mode = #tpu.pipeline_mode<synchronous>, transform_indices = @transform_6, window_bounds = array<i64: 1, 128>}, {transform_indices = @transform_7, window_bounds = array<i64: 256, 128>}]} {
    %c0 = arith.constant 0 : index
    %c0_0 = arith.constant 0 : index
    %0 = vector.load %arg1[%c0, %c0_0] : memref<256x128xf32, #tpu.memory_space<vmem>>, vector<256x128xf32>
    %cst = arith.constant dense<0.000000e+00> : vector<256xf32>
    %1 = vector.multi_reduction <add>, %0, %cst [1] : vector<256x128xf32> to vector<256xf32>
    %2 = vector.shape_cast %1 : vector<256xf32> to vector<256x1xf32>
    %cst_1 = arith.constant 1.280000e+02 : f32
    %3 = vector.broadcast %cst_1 : f32 to vector<256x1xf32>
    %4 = arith.divf %2, %3 : vector<256x1xf32>
    %5 = vector.broadcast %4 : vector<256x1xf32> to vector<256x128xf32>
    %6 = arith.subf %0, %5 : vector<256x128xf32>
    %7 = arith.mulf %6, %6 : vector<256x128xf32>
    %cst_2 = arith.constant dense<0.000000e+00> : vector<256xf32>
    %8 = vector.multi_reduction <add>, %7, %cst_2 [1] : vector<256x128xf32> to vector<256xf32>
    %9 = vector.shape_cast %8 : vector<256xf32> to vector<256x1xf32>
    %cst_3 = arith.constant 1.280000e+02 : f32
    %10 = vector.broadcast %cst_3 : f32 to vector<256x1xf32>
    %11 = arith.divf %9, %10 : vector<256x1xf32>
    %12 = vector.broadcast %4 : vector<256x1xf32> to vector<256x128xf32>
    %13 = arith.subf %0, %12 : vector<256x128xf32>
    %cst_4 = arith.constant 9.99999974E-6 : f32
    %14 = vector.broadcast %cst_4 : f32 to vector<256x1xf32>
    %15 = arith.addf %11, %14 : vector<256x1xf32>
    %16 = math.rsqrt %15 : vector<256x1xf32>
    %17 = vector.broadcast %16 : vector<256x1xf32> to vector<256x128xf32>
    %18 = arith.mulf %13, %17 : vector<256x128xf32>
    %c0_5 = arith.constant 0 : index
    %c0_6 = arith.constant 0 : index
    %19 = vector.load %arg2[%c0_5, %c0_6] : memref<1x128xf32, #tpu.memory_space<vmem>>, vector<1x128xf32>
    %20 = vector.broadcast %19 : vector<1x128xf32> to vector<256x128xf32>
    %21 = arith.mulf %18, %20 : vector<256x128xf32>
    %c0_7 = arith.constant 0 : index
    %c0_8 = arith.constant 0 : index
    %22 = vector.load %arg3[%c0_7, %c0_8] : memref<1x128xf32, #tpu.memory_space<vmem>>, vector<1x128xf32>
    %23 = vector.broadcast %22 : vector<1x128xf32> to vector<256x128xf32>
    %24 = arith.addf %21, %23 : vector<256x128xf32>
    %25 = arith.truncf %24 : vector<256x128xf32> to vector<256x128xbf16>
    %c0_9 = arith.constant 0 : index
    %c0_10 = arith.constant 0 : index
    %26 = vector.load %arg4[%c0_9, %c0_10] : memref<128x256xbf16, #tpu.memory_space<vmem>>, vector<128x256xbf16>
    %cst_11 = arith.constant dense<0.000000e+00> : vector<256x256xf32>
    %27 = tpu.matmul %25, %26, %cst_11 {dimension_numbers = #tpu.dot_dimension_numbers<[1], [0], [0], [1], [0, 0, 1, 1], [], []>} : vector<256x128xbf16>, vector<128x256xbf16>, vector<256x256xf32> -> vector<256x256xf32>
    %c0_12 = arith.constant 0 : index
    %c0_13 = arith.constant 0 : index
    %28 = vector.load %arg5[%c0_12, %c0_13] : memref<1x256xf32, #tpu.memory_space<vmem>>, vector<1x256xf32>
    %29 = vector.broadcast %28 : vector<1x256xf32> to vector<256x256xf32>
    %30 = arith.addf %27, %29 : vector<256x256xf32>
    %cst_14 = arith.constant 5.000000e-01 : f32
    %31 = vector.broadcast %cst_14 : f32 to vector<256x256xf32>
    %32 = arith.mulf %31, %30 : vector<256x256xf32>
    %cst_15 = arith.constant 0.707106769 : f32
    %33 = vector.broadcast %cst_15 : f32 to vector<256x256xf32>
    %34 = arith.mulf %30, %33 : vector<256x256xf32>
    %35 = math.erf %34 : vector<256x256xf32>
    %cst_16 = arith.constant 1.000000e+00 : f32
    %36 = vector.broadcast %cst_16 : f32 to vector<256x256xf32>
    %37 = arith.addf %36, %35 : vector<256x256xf32>
    %38 = arith.mulf %32, %37 : vector<256x256xf32>
    %39 = arith.truncf %38 : vector<256x256xf32> to vector<256x256xbf16>
    %c0_17 = arith.constant 0 : index
    %c0_18 = arith.constant 0 : index
    %40 = vector.load %arg6[%c0_17, %c0_18] : memref<256x128xbf16, #tpu.memory_space<vmem>>, vector<256x128xbf16>
    %cst_19 = arith.constant dense<0.000000e+00> : vector<256x128xf32>
    %41 = tpu.matmul %39, %40, %cst_19 {dimension_numbers = #tpu.dot_dimension_numbers<[1], [0], [0], [1], [0, 0, 1, 1], [], []>} : vector<256x256xbf16>, vector<256x128xbf16>, vector<256x128xf32> -> vector<256x128xf32>
    %c0_20 = arith.constant 0 : index
    %c0_21 = arith.constant 0 : index
    %42 = vector.load %arg7[%c0_20, %c0_21] : memref<1x128xf32, #tpu.memory_space<vmem>>, vector<1x128xf32>
    %43 = vector.broadcast %42 : vector<1x128xf32> to vector<256x128xf32>
    %44 = arith.addf %41, %43 : vector<256x128xf32>
    %45 = arith.addf %0, %44 : vector<256x128xf32>
    %c0_22 = arith.constant 0 : index
    %c0_23 = arith.constant 0 : index
    %46 = vector.load %arg8[%c0_22, %c0_23] : memref<256x128xf32, #tpu.memory_space<vmem>>, vector<256x128xf32>
    tpu.vector_store %arg8[%c0_22, %c0_23], %45 {strides = array<i32>} : memref<256x128xf32, #tpu.memory_space<vmem>>, vector<256x128xf32>,
    return
  }
  func.func @transform_0(%arg0: i32) -> (i32, i32) {
    %c0_i32 = arith.constant 0 : i32
    %c0_i32_0 = arith.constant 0 : i32
    return %arg0, %c0_i32 : i32, i32
  }
  func.func @transform_1(%arg0: i32) -> (i32, i32) {
    %c0_i32 = arith.constant 0 : i32
    %c0_i32_0 = arith.constant 0 : i32
    %c0_i32_1 = arith.constant 0 : i32
    return %c0_i32, %c0_i32_0 : i32, i32
  }
  func.func @transform_2(%arg0: i32) -> (i32, i32) {
    %c0_i32 = arith.constant 0 : i32
    %c0_i32_0 = arith.constant 0 : i32
    %c0_i32_1 = arith.constant 0 : i32
    return %c0_i32, %c0_i32_0 : i32, i32
  }
  func.func @transform_3(%arg0: i32) -> (i32, i32) {
    %c0_i32 = arith.constant 0 : i32
    %c0_i32_0 = arith.constant 0 : i32
    %c0_i32_1 = arith.constant 0 : i32
    return %c0_i32, %c0_i32_0 : i32, i32
  }
  func.func @transform_4(%arg0: i32) -> (i32, i32) {
    %c0_i32 = arith.constant 0 : i32
    %c0_i32_0 = arith.constant 0 : i32
    %c0_i32_1 = arith.constant 0 : i32
    return %c0_i32, %c0_i32_0 : i32, i32
  }
  func.func @transform_5(%arg0: i32) -> (i32, i32) {
    %c0_i32 = arith.constant 0 : i32
    %c0_i32_0 = arith.constant 0 : i32
    %c0_i32_1 = arith.constant 0 : i32
    return %c0_i32, %c0_i32_0 : i32, i32
  }
  func.func @transform_6(%arg0: i32) -> (i32, i32) {
    %c0_i32 = arith.constant 0 : i32
    %c0_i32_0 = arith.constant 0 : i32
    %c0_i32_1 = arith.constant 0 : i32
    return %c0_i32, %c0_i32_0 : i32, i32
  }
  func.func @transform_7(%arg0: i32) -> (i32, i32) {
    %c0_i32 = arith.constant 0 : i32
    %c0_i32_0 = arith.constant 0 : i32
    return %arg0, %c0_i32 : i32, i32
  }
}

</mosaic_0001>

<llo_original>
// kernel: tpu_custom_call.1
$region0: #{tpu_custom_call.1}
  #allocation0 [shape = 'u32[]', space=smem, size = 0x4, offset = 0x4, fixed_abs, tag = 'smem constant byte address 0x4 - core index']
  #allocation1 [shape = 'u32[144,128]{1,0:T(1,128)}', space=vmem, size = 0x12000, scoped, tag = 'internal scratch']
  %s0 = inlined_call_operand.hbm [shape: f32[512,128], index: 0, kind: input, shape index: {}]
  %s1 = inlined_call_operand.hbm [shape: f32[1,128], index: 1, kind: input, shape index: {}]
  %s2 = inlined_call_operand.hbm [shape: f32[1,128], index: 2, kind: input, shape index: {}]
  %s3 = inlined_call_operand.hbm [shape: bf16[128,256], index: 3, kind: input, shape index: {}]
  %s4 = inlined_call_operand.hbm [shape: f32[1,256], index: 4, kind: input, shape index: {}]
  %s5 = inlined_call_operand.hbm [shape: bf16[256,128], index: 5, kind: input, shape index: {}]
  %s6 = inlined_call_operand.hbm [shape: f32[1,128], index: 6, kind: input, shape index: {}]
  %s7 = inlined_call_operand.hbm [shape: f32[512,128], index: 7, kind: output, shape index: {}]
  %s8 = sld [smem:[#allocation0]]
  $region89: #{tpu_custom_call.1} parent=0
    _
  %s10 = ssub.s32 1, %s8
  %s11 = scalar_select 0, %s10, %s8
  $region1: #{tpu_custom_call.1} parent=0
    #allocation2 [shape = 'u8[262144]{0}', space=vmem, size = 0x40000, scoped, tag = 'input window, operand 0']
    #allocation3 [shape = 's32[2]{0}', space=sflag, size = 0x8, scoped, tag = 'scoped memory for tpu_custom_call.1']
    #allocation4 [shape = 's32[2]{0}', space=sflag, size = 0x8, scoped, tag = 'scoped memory for tpu_custom_call.1']
    #allocation5 [shape = 'u8[512]{0}', space=vmem, size = 0x400, scoped, tag = 'input window, operand 1, single buffered']
    #allocation6 [shape = 's32[1]{0}', space=sflag, size = 0x4, scoped, tag = 'scoped memory for tpu_custom_call.1']
    #allocation7 [shape = 'u8[512]{0}', space=vmem, size = 0x400, scoped, tag = 'input window, operand 2, single buffered']
    #allocation8 [shape = 'u8[65536]{0}', space=vmem, size = 0x10000, scoped, tag = 'input window, operand 3, single buffered']
    #allocation9 [shape = 's32[1]{0}', space=sflag, size = 0x4, scoped, tag = 'scoped memory for tpu_custom_call.1']
    #allocation10 [shape = 'u8[1024]{0}', space=vmem, size = 0x400, scoped, tag = 'input window, operand 4, single buffered']
    #allocation11 [shape = 'u8[65536]{0}', space=vmem, size = 0x10000, scoped, tag = 'input window, operand 5, single buffered']
    #allocation12 [shape = 's32[1]{0}', space=sflag, size = 0x4, scoped, tag = 'scoped memory for tpu_custom_call.1']
    #allocation13 [shape = 'u8[512]{0}', space=vmem, size = 0x400, scoped, tag = 'input window, operand 6, single buffered']
    #allocation14 [shape = 'u8[262144]{0}', space=vmem, size = 0x40000, scoped, tag = 'output window, operand 0']
    %12 = vsyncpa [#allocation3], 0
    %s13 = scalar_lea.sflag [#allocation3], 1
    %14 = vsyncpa %s13, 0
    %15 = vsyncpa [#allocation6], 0
    %16 = vsyncpa [#allocation9], 0
    %17 = vsyncpa [#allocation12], 0
    %18 = vsyncpa [#allocation4], 0
    %s19 = scalar_lea.sflag [#allocation4], 1
    %20 = vsyncpa %s19, 0
    loop: start=0, step=1, limit=4
    $region2: #{tpu_custom_call.1} parent=1 // loop_pre_header
      _
    $region3: #{tpu_custom_call.1} parent=1 // loop_header
      %s22 = sphi 0, %s26
      %p23 = scmp.ge.s32.totalorder %s22, 4
      %s32 = sphi 0, %s34
      %s35 = sphi 0, %s32
      %s36 = sphi 0, %s35
      %s52 = sphi 0, %s36
      %s56 = sphi 0, %s56
      %s58 = sphi 0, %s56
      %s59 = sphi 0, %s58
      %s73 = sphi 0, %s59
      %s77 = sphi 0, %s77
      %s79 = sphi 0, %s77
      %s80 = sphi 0, %s79
      %s94 = sphi 0, %s80
      %s98 = sphi 0, %s98
      %s100 = sphi 0, %s98
      %s101 = sphi 0, %s100
      %s115 = sphi 0, %s101
      %s119 = sphi 0, %s119
      %s121 = sphi 0, %s119
      %s122 = sphi 0, %s121
      %s136 = sphi 0, %s122
      %s140 = sphi 0, %s140
      %s142 = sphi 0, %s140
      %s143 = sphi 0, %s142
      %s157 = sphi 0, %s143
      %s161 = sphi 0, %s161
      %s163 = sphi 0, %s161
      %s164 = sphi 0, %s163
      %s178 = sphi 0, %s164
      %s184 = sphi 0, %s186
      %s187 = sphi 0, %s184
      %s188 = sphi 0, %s187
      %s204 = sphi 0, %s188
    $region4: #{tpu_custom_call.1} parent=1 // loop_header_branch
      %25 = sbr.rel (%p23) target = $region8
    $region5: #{tpu_custom_call.1} parent=1 // loop_body
      %s27 = ssub.s32 %s22, 1
      %s28 = ssub.s32 %s22, 2
      %s29 = sadd.s32 %s22, 1
      %s30 = ssub.s32 %s22, %s29
      %p31 = scmp.eq.s32.totalorder %s30, 0
      %s33 = sadd.s32 %s32, 1
      %s34 = scalar_select %p31, %s32, %s33
      %p37 = pneg %p31
      %p38 = scmp.eq.s32.totalorder %s22, 1
      %p39 = por %p37, %p38
      %p40 = scmp.ne.s32.totalorder %s32, %s35
      %p41 = scmp.eq.s32.totalorder %s22, 0
      %p42 = por %p40, %p41
      %p43 = scmp.ne.s32.totalorder %s32, %s35
      %p44 = scmp.eq.s32.totalorder %s27, 1
      %p45 = por %p43, %p44
      %p46 = scmp.ne.s32.totalorder %s35, %s36
      %p47 = scmp.eq.s32.totalorder %s27, 0
      %p48 = por %p46, %p47
      %p49 = scmp.ne.s32.totalorder %s35, %s36
      %p50 = scmp.eq.s32.totalorder %s28, 1
      %p51 = por %p49, %p50
      %p53 = scmp.ne.s32.totalorder %s36, %s52
      %p54 = scmp.eq.s32.totalorder %s28, 0
      %p55 = por %p53, %p54
      %s57 = sadd.s32 %s56, 1
      %p60 = scmp.eq.s32.totalorder %s22, 1
      %p61 = scmp.ne.s32.totalorder %s56, %s58
      %p62 = scmp.eq.s32.totalorder %s22, 0
      %p63 = por %p61, %p62
      %p64 = scmp.ne.s32.totalorder %s56, %s58
      %p65 = scmp.eq.s32.totalorder %s27, 1
      %p66 = por %p64, %p65
      %p67 = scmp.ne.s32.totalorder %s58, %s59
      %p68 = scmp.eq.s32.totalorder %s27, 0
      %p69 = por %p67, %p68
      %p70 = scmp.ne.s32.totalorder %s58, %s59
      %p71 = scmp.eq.s32.totalorder %s28, 1
      %p72 = por %p70, %p71
      %p74 = scmp.ne.s32.totalorder %s59, %s73
      %p75 = scmp.eq.s32.totalorder %s28, 0
      %p76 = por %p74, %p75
      %s78 = sadd.s32 %s77, 1
      %p81 = scmp.eq.s32.totalorder %s22, 1
      %p82 = scmp.ne.s32.totalorder %s77, %s79
      %p83 = scmp.eq.s32.totalorder %s22, 0
      %p84 = por %p82, %p83
      %p85 = scmp.ne.s32.totalorder %s77, %s79
      %p86 = scmp.eq.s32.totalorder %s27, 1
      %p87 = por %p85, %p86
      %p88 = scmp.ne.s32.totalorder %s79, %s80
      %p89 = scmp.eq.s32.totalorder %s27, 0
      %p90 = por %p88, %p89
      %p91 = scmp.ne.s32.totalorder %s79, %s80
      %p92 = scmp.eq.s32.totalorder %s28, 1
      %p93 = por %p91, %p92
      %p95 = scmp.ne.s32.totalorder %s80, %s94
      %p96 = scmp.eq.s32.totalorder %s28, 0
      %p97 = por %p95, %p96
      %s99 = sadd.s32 %s98, 1
      %p102 = scmp.eq.s32.totalorder %s22, 1
      %p103 = scmp.ne.s32.totalorder %s98, %s100
      %p104 = scmp.eq.s32.totalorder %s22, 0
      %p105 = por %p103, %p104
      %p106 = scmp.ne.s32.totalorder %s98, %s100
      %p107 = scmp.eq.s32.totalorder %s27, 1
      %p108 = por %p106, %p107
      %p109 = scmp.ne.s32.totalorder %s100, %s101
      %p110 = scmp.eq.s32.totalorder %s27, 0
      %p111 = por %p109, %p110
      %p112 = scmp.ne.s32.totalorder %s100, %s101
      %p113 = scmp.eq.s32.totalorder %s28, 1
      %p114 = por %p112, %p113
      %p116 = scmp.ne.s32.totalorder %s101, %s115
      %p117 = scmp.eq.s32.totalorder %s28, 0
      %p118 = por %p116, %p117
      %s120 = sadd.s32 %s119, 1
      %p123 = scmp.eq.s32.totalorder %s22, 1
      %p124 = scmp.ne.s32.totalorder %s119, %s121
      %p125 = scmp.eq.s32.totalorder %s22, 0
      %p126 = por %p124, %p125
      %p127 = scmp.ne.s32.totalorder %s119, %s121
      %p128 = scmp.eq.s32.totalorder %s27, 1
      %p129 = por %p127, %p128
      %p130 = scmp.ne.s32.totalorder %s121, %s122
      %p131 = scmp.eq.s32.totalorder %s27, 0
      %p132 = por %p130, %p131
      %p133 = scmp.ne.s32.totalorder %s121, %s122
      %p134 = scmp.eq.s32.totalorder %s28, 1
      %p135 = por %p133, %p134
      %p137 = scmp.ne.s32.totalorder %s122, %s136
      %p138 = scmp.eq.s32.totalorder %s28, 0
      %p139 = por %p137, %p138
      %s141 = sadd.s32 %s140, 1
      %p144 = scmp.eq.s32.totalorder %s22, 1
      %p145 = scmp.ne.s32.totalorder %s140, %s142
      %p146 = scmp.eq.s32.totalorder %s22, 0
      %p147 = por %p145, %p146
      %p148 = scmp.ne.s32.totalorder %s140, %s142
      %p149 = scmp.eq.s32.totalorder %s27, 1
      %p150 = por %p148, %p149
      %p151 = scmp.ne.s32.totalorder %s142, %s143
      %p152 = scmp.eq.s32.totalorder %s27, 0
      %p153 = por %p151, %p152
      %p154 = scmp.ne.s32.totalorder %s142, %s143
      %p155 = scmp.eq.s32.totalorder %s28, 1
      %p156 = por %p154, %p155
      %p158 = scmp.ne.s32.totalorder %s143, %s157
      %p159 = scmp.eq.s32.totalorder %s28, 0
      %p160 = por %p158, %p159
      %s162 = sadd.s32 %s161, 1
      %p165 = scmp.eq.s32.totalorder %s22, 1
      %p166 = scmp.ne.s32.totalorder %s161, %s163
      %p167 = scmp.eq.s32.totalorder %s22, 0
      %p168 = por %p166, %p167
      %p169 = scmp.ne.s32.totalorder %s161, %s163
      %p170 = scmp.eq.s32.totalorder %s27, 1
      %p171 = por %p169, %p170
      %p172 = scmp.ne.s32.totalorder %s163, %s164
      %p173 = scmp.eq.s32.totalorder %s27, 0
      %p174 = por %p172, %p173
      %p175 = scmp.ne.s32.totalorder %s163, %s164
      %p176 = scmp.eq.s32.totalorder %s28, 1
      %p177 = por %p175, %p176
      %p179 = scmp.ne.s32.totalorder %s164, %s178
      %p180 = scmp.eq.s32.totalorder %s28, 0
      %p181 = por %p179, %p180
      %s182 = ssub.s32 %s22, %s29
      %p183 = scmp.eq.s32.totalorder %s182, 0
      %s185 = sadd.s32 %s184, 1
      %s186 = scalar_select %p183, %s184, %s185
      %p189 = pneg %p183
      %p190 = scmp.eq.s32.totalorder %s22, 1
      %p191 = por %p189, %p190
      %p192 = scmp.ne.s32.totalorder %s184, %s187
      %p193 = scmp.eq.s32.totalorder %s22, 0
      %p194 = por %p192, %p193
      %p195 = scmp.ne.s32.totalorder %s184, %s187
      %p196 = scmp.eq.s32.totalorder %s27, 1
      %p197 = por %p195, %p196
      %p198 = scmp.ne.s32.totalorder %s187, %s188
      %p199 = scmp.eq.s32.totalorder %s27, 0
      %p200 = por %p198, %p199
      %p201 = scmp.ne.s32.totalorder %s187, %s188
      %p202 = scmp.eq.s32.totalorder %s28, 1
      %p203 = por %p201, %p202
      %p205 = scmp.ne.s32.totalorder %s188, %s204
      %p206 = scmp.eq.s32.totalorder %s28, 0
      %p207 = por %p205, %p206
      %p208 = scmp.le.s32.totalorder 1, %s22
      %p209 = scmp.lt.s32.totalorder %s22, 3
      %p210 = pnand %p208, %p209
      %p211 = pneg %p210
      // Predicated region
      $region9: #{tpu_custom_call.1} parent=5 // pred_check
        _
      $region10: #{tpu_custom_call.1} parent=5 // pred_check_branch
        %213 = sbr.rel (%p210) target = $region12
      $region11: #{tpu_custom_call.1} parent=5 // pred_region
        %s214 = ssub.s32 %s22, 1
        // Predicated region
        $region13: #{tpu_custom_call.1} parent=11 // pred_check
          %p215 = pneg %p69
        $region14: #{tpu_custom_call.1} parent=11 // pred_check_branch
          %217 = sbr.rel (%p215) target = $region16
        $region15: #{tpu_custom_call.1} parent=11 // pred_region
          %s219 = ssub.s32 16, 16
          %220 = vsyncadd [#allocation6], %s219
          %s222 = sshll.u32 [#allocation5], 4
          %s223 = int_to_ptr.vmem [resolvable:$true] %s222
          %225 = dma.hbm_to_vmem [thread:$0]  %s1, 16, %s223, [#allocation6]
        $region16: #{tpu_custom_call.1} parent=11 // pred_fallthru
          _
        // Predicated region
        $region17: #{tpu_custom_call.1} parent=11 // pred_check
          %p226 = pneg %p90
        $region18: #{tpu_custom_call.1} parent=11 // pred_check_branch
          %228 = sbr.rel (%p226) target = $region20
        $region19: #{tpu_custom_call.1} parent=11 // pred_region
          %s230 = ssub.s32 16, 16
          %231 = vsyncadd [#allocation6], %s230
          %s233 = sshll.u32 [#allocation7], 4
          %s234 = int_to_ptr.vmem [resolvable:$true] %s233
          %236 = dma.hbm_to_vmem [thread:$0]  %s2, 16, %s234, [#allocation6]
        $region20: #{tpu_custom_call.1} parent=11 // pred_fallthru
          _
        // Predicated region
        $region21: #{tpu_custom_call.1} parent=11 // pred_check
          %p237 = pneg %p111
        $region22: #{tpu_custom_call.1} parent=11 // pred_check_branch
          %239 = sbr.rel (%p237) target = $region24
        $region23: #{tpu_custom_call.1} parent=11 // pred_region
          %s241 = ssub.s32 2048, 2048
          %242 = vsyncadd [#allocation9], %s241
          %s243 = sshll.u32 [#allocation8], 4
          %s244 = int_to_ptr.vmem [resolvable:$true] %s243
          %249 = dma.hbm_to_vmem [thread:$0]  %s3, 2048, %s244, [#allocation9], 128, 128, 8
        $region24: #{tpu_custom_call.1} parent=11 // pred_fallthru
          _
        // Predicated region
        $region25: #{tpu_custom_call.1} parent=11 // pred_check
          %p250 = pneg %p132
        $region26: #{tpu_custom_call.1} parent=11 // pred_check_branch
          %252 = sbr.rel (%p250) target = $region28
        $region27: #{tpu_custom_call.1} parent=11 // pred_region
          %s254 = ssub.s32 32, 32
          %255 = vsyncadd [#allocation9], %s254
          %s257 = sshll.u32 [#allocation10], 4
          %s258 = int_to_ptr.vmem [resolvable:$true] %s257
          %260 = dma.hbm_to_vmem [thread:$0]  %s4, 32, %s258, [#allocation9]
        $region28: #{tpu_custom_call.1} parent=11 // pred_fallthru
          _
        // Predicated region
        $region29: #{tpu_custom_call.1} parent=11 // pred_check
          %p261 = pneg %p153
        $region30: #{tpu_custom_call.1} parent=11 // pred_check_branch
          %263 = sbr.rel (%p261) target = $region32
        $region31: #{tpu_custom_call.1} parent=11 // pred_region
          %s265 = ssub.s32 2048, 2048
          %266 = vsyncadd [#allocation12], %s265
          %s267 = sshll.u32 [#allocation11], 4
          %s268 = int_to_ptr.vmem [resolvable:$true] %s267
          %273 = dma.hbm_to_vmem [thread:$0]  %s5, 2048, %s268, [#allocation12], 64, 64, 4
        $region32: #{tpu_custom_call.1} parent=11 // pred_fallthru
          _
        // Predicated region
        $region33: #{tpu_custom_call.1} parent=11 // pred_check
          %p274 = pneg %p174
        $region34: #{tpu_custom_call.1} parent=11 // pred_check_branch
          %276 = sbr.rel (%p274) target = $region36
        $region35: #{tpu_custom_call.1} parent=11 // pred_region
          %s278 = ssub.s32 16, 16
          %279 = vsyncadd [#allocation12], %s278
          %s281 = sshll.u32 [#allocation13], 4
          %s282 = int_to_ptr.vmem [resolvable:$true] %s281
          %284 = dma.hbm_to_vmem [thread:$0]  %s6, 16, %s282, [#allocation12]
        $region36: #{tpu_custom_call.1} parent=11 // pred_fallthru
          _
      $region12: #{tpu_custom_call.1} parent=5 // pred_fallthru
        _
      %p285 = scmp.lt.s32.totalorder %s22, 2
      // Predicated region
      $region37: #{tpu_custom_call.1} parent=5 // pred_check
        %p286 = pneg %p285
      $region38: #{tpu_custom_call.1} parent=5 // pred_check_branch
        %288 = sbr.rel (%p286) target = $region40
      $region39: #{tpu_custom_call.1} parent=5 // pred_region
        // Predicated region
        $region41: #{tpu_custom_call.1} parent=39 // pred_check
          %p289 = pneg %p42
        $region42: #{tpu_custom_call.1} parent=39 // pred_check_branch
          %291 = sbr.rel (%p289) target = $region44
        $region43: #{tpu_custom_call.1} parent=39 // pred_region
          %s292 = sand.u32 %s32, 1
          %s293 = scalar_lea.sflag [#allocation3], %s292
          %s294 = sand.u32 %s32, 1
          %s295 = smul.addr %s294, 256
          %s296 = scalar_lea.vmem [#allocation2], %s295
          %s297 = smul.u32 32, %s22
          %s299 = ssub.s32 4096, 4096
          %300 = vsyncadd %s293, %s299
          %s301 = smul.addr %s297, 128
          %s302 = scalar_lea.hbm %s0, %s301
          %s303 = sshll.u32 %s296, 4
          %s304 = int_to_ptr.vmem [resolvable:$true] %s303
          %309 = dma.hbm_to_vmem [thread:$0]  %s302, 4096, %s304, %s293, 128, 128, 8
        $region44: #{tpu_custom_call.1} parent=39 // pred_fallthru
          _
      $region40: #{tpu_custom_call.1} parent=5 // pred_fallthru
        _
      %p310 = scmp.le.s32.totalorder 1, %s22
      %p311 = scmp.lt.s32.totalorder %s22, 3
      %p312 = pnand %p310, %p311
      %p313 = pneg %p312
      // Predicated region
      $region45: #{tpu_custom_call.1} parent=5 // pred_check
        _
      $region46: #{tpu_custom_call.1} parent=5 // pred_check_branch
        %315 = sbr.rel (%p312) target = $region48
      $region47: #{tpu_custom_call.1} parent=5 // pred_region
        %s316 = ssub.s32 %s22, 1
        %s317 = sand.u32 %s35, 1
        %s318 = scalar_lea.sflag [#allocation3], %s317
        %s319 = sand.u32 %s35, 1
        %s320 = smul.addr %s319, 256
        %s321 = scalar_lea.vmem [#allocation2], %s320
        // Predicated region
        $region49: #{tpu_custom_call.1} parent=47 // pred_check
          %p322 = pneg %p48
        $region50: #{tpu_custom_call.1} parent=47 // pred_check_branch
          %324 = sbr.rel (%p322) target = $region52
        $region51: #{tpu_custom_call.1} parent=47 // pred_region
          %325 = dma.done %s318, 4096
        $region52: #{tpu_custom_call.1} parent=47 // pred_fallthru
          _
        // Predicated region
        $region53: #{tpu_custom_call.1} parent=47 // pred_check
          %p326 = pneg %p69
        $region54: #{tpu_custom_call.1} parent=47 // pred_check_branch
          %328 = sbr.rel (%p326) target = $region56
        $region55: #{tpu_custom_call.1} parent=47 // pred_region
          %329 = dma.done [#allocation6], 16
        $region56: #{tpu_custom_call.1} parent=47 // pred_fallthru
          _
        // Predicated region
        $region57: #{tpu_custom_call.1} parent=47 // pred_check
          %p330 = pneg %p90
        $region58: #{tpu_custom_call.1} parent=47 // pred_check_branch
          %332 = sbr.rel (%p330) target = $region60
        $region59: #{tpu_custom_call.1} parent=47 // pred_region
          %333 = dma.done [#allocation6], 16
        $region60: #{tpu_custom_call.1} parent=47 // pred_fallthru
          _
        // Predicated region
        $region61: #{tpu_custom_call.1} parent=47 // pred_check
          %p334 = pneg %p111
        $region62: #{tpu_custom_call.1} parent=47 // pred_check_branch
          %336 = sbr.rel (%p334) target = $region64
        $region63: #{tpu_custom_call.1} parent=47 // pred_region
          %337 = dma.done [#allocation9], 2048
        $region64: #{tpu_custom_call.1} parent=47 // pred_fallthru
          _
        // Predicated region
        $region65: #{tpu_custom_call.1} parent=47 // pred_check
          %p338 = pneg %p132
        $region66: #{tpu_custom_call.1} parent=47 // pred_check_branch
          %340 = sbr.rel (%p338) target = $region68
        $region67: #{tpu_custom_call.1} parent=47 // pred_region
          %341 = dma.done [#allocation9], 32
        $region68: #{tpu_custom_call.1} parent=47 // pred_fallthru
          _
        // Predicated region
        $region69: #{tpu_custom_call.1} parent=47 // pred_check
          %p342 = pneg %p153
        $region70: #{tpu_custom_call.1} parent=47 // pred_check_branch
          %344 = sbr.rel (%p342) target = $region72
        $region71: #{tpu_custom_call.1} parent=47 // pred_region
          %345 = dma.done [#allocation12], 2048
        $region72: #{tpu_custom_call.1} parent=47 // pred_fallthru
          _
        // Predicated region
        $region73: #{tpu_custom_call.1} parent=47 // pred_check
          %p346 = pneg %p174
        $region74: #{tpu_custom_call.1} parent=47 // pred_check_branch
          %348 = sbr.rel (%p346) target = $region76
        $region75: #{tpu_custom_call.1} parent=47 // pred_region
          %349 = dma.done [#allocation12], 16
        $region76: #{tpu_custom_call.1} parent=47 // pred_fallthru
          _
        %s350 = sand.u32 %s35, 1
        %s351 = scalar_lea.sflag [#allocation3], %s350
        %s352 = sand.u32 %s35, 1
        %s353 = smul.addr %s352, 256
        %s354 = scalar_lea.vmem [#allocation2], %s353
        %p355 = pneg %p48
        %p356 = pneg %p45
        %p357 = pneg %p69
        %p358 = pneg %p66
        %p359 = pneg %p90
        %p360 = pneg %p87
        %p361 = pneg %p111
        %p362 = pneg %p108
        %p363 = pneg %p132
        %p364 = pneg %p129
        %p365 = pneg %p153
        %p366 = pneg %p150
        %p367 = pneg %p174
        %p368 = pneg %p171
        %p369 = pneg %p200
        %p370 = pneg %p197
        %s371 = sand.u32 %s187, 1
        %s372 = scalar_lea.sflag [#allocation4], %s371
        %s373 = sand.u32 %s187, 1
        %s374 = smul.addr %s373, 256
        %s375 = scalar_lea.vmem [#allocation14], %s374
        %s376 = smul.u32 32, %s27
        %s377 = smul.u32 32, %s27
        %v379 = vld [vmem:[%s321] sm:$0xff]
        %v380 = vld [vmem:[%s321 + $0x8] sm:$0xff]
        %v381 = vld [vmem:[%s321 + $0x10] sm:$0xff]
        %v382 = vld [vmem:[%s321 + $0x18] sm:$0xff]
        %v383 = vld [vmem:[%s321 + $0x20] sm:$0xff]
        %v384 = vld [vmem:[%s321 + $0x28] sm:$0xff]
        %v385 = vld [vmem:[%s321 + $0x30] sm:$0xff]
        %v386 = vld [vmem:[%s321 + $0x38] sm:$0xff]
        %v387 = vld [vmem:[%s321 + $0x40] sm:$0xff]
        %v388 = vld [vmem:[%s321 + $0x48] sm:$0xff]
        %v389 = vld [vmem:[%s321 + $0x50] sm:$0xff]
        %v390 = vld [vmem:[%s321 + $0x58] sm:$0xff]
        %v391 = vld [vmem:[%s321 + $0x60] sm:$0xff]
        %v392 = vld [vmem:[%s321 + $0x68] sm:$0xff]
        %v393 = vld [vmem:[%s321 + $0x70] sm:$0xff]
        %v394 = vld [vmem:[%s321 + $0x78] sm:$0xff]
        %v395 = vld [vmem:[%s321 + $0x80] sm:$0xff]
        %v396 = vld [vmem:[%s321 + $0x88] sm:$0xff]
        %v397 = vld [vmem:[%s321 + $0x90] sm:$0xff]
        %v398 = vld [vmem:[%s321 + $0x98] sm:$0xff]
        %v399 = vld [vmem:[%s321 + $0xa0] sm:$0xff]
        %v400 = vld [vmem:[%s321 + $0xa8] sm:$0xff]
        %v401 = vld [vmem:[%s321 + $0xb0] sm:$0xff]
        %v402 = vld [vmem:[%s321 + $0xb8] sm:$0xff]
        %v403 = vld [vmem:[%s321 + $0xc0] sm:$0xff]
        %v404 = vld [vmem:[%s321 + $0xc8] sm:$0xff]
        %v405 = vld [vmem:[%s321 + $0xd0] sm:$0xff]
        %v406 = vld [vmem:[%s321 + $0xd8] sm:$0xff]
        %v407 = vld [vmem:[%s321 + $0xe0] sm:$0xff]
        %v408 = vld [vmem:[%s321 + $0xe8] sm:$0xff]
        %v409 = vld [vmem:[%s321 + $0xf0] sm:$0xff]
        %v410 = vld [vmem:[%s321 + $0xf8] sm:$0xff]
        %411 = vadd.xlane.f32.xlu0 %v379
        %v412 = vpop.xlane.xlu0 %411
        %413 = vadd.xlane.f32.xlu0 %v380
        %v414 = vpop.xlane.xlu0 %413
        %415 = vadd.xlane.f32.xlu0 %v381
        %v416 = vpop.xlane.xlu0 %415
        %417 = vadd.xlane.f32.xlu0 %v382
        %v418 = vpop.xlane.xlu0 %417
        %419 = vadd.xlane.f32.xlu0 %v383
        %v420 = vpop.xlane.xlu0 %419
        %421 = vadd.xlane.f32.xlu0 %v384
        %v422 = vpop.xlane.xlu0 %421
        %423 = vadd.xlane.f32.xlu0 %v385
        %v424 = vpop.xlane.xlu0 %423
        %425 = vadd.xlane.f32.xlu0 %v386
        %v426 = vpop.xlane.xlu0 %425
        %427 = vadd.xlane.f32.xlu0 %v387
        %v428 = vpop.xlane.xlu0 %427
        %429 = vadd.xlane.f32.xlu0 %v388
        %v430 = vpop.xlane.xlu0 %429
        %431 = vadd.xlane.f32.xlu0 %v389
        %v432 = vpop.xlane.xlu0 %431
        %433 = vadd.xlane.f32.xlu0 %v390
        %v434 = vpop.xlane.xlu0 %433
        %435 = vadd.xlane.f32.xlu0 %v391
        %v436 = vpop.xlane.xlu0 %435
        %437 = vadd.xlane.f32.xlu0 %v392
        %v438 = vpop.xlane.xlu0 %437
        %439 = vadd.xlane.f32.xlu0 %v393
        %v440 = vpop.xlane.xlu0 %439
        %441 = vadd.xlane.f32.xlu0 %v394
        %v442 = vpop.xlane.xlu0 %441
        %443 = vadd.xlane.f32.xlu0 %v395
        %v444 = vpop.xlane.xlu0 %443
        %445 = vadd.xlane.f32.xlu0 %v396
        %v446 = vpop.xlane.xlu0 %445
        %447 = vadd.xlane.f32.xlu0 %v397
        %v448 = vpop.xlane.xlu0 %447
        %449 = vadd.xlane.f32.xlu0 %v398
        %v450 = vpop.xlane.xlu0 %449
        %451 = vadd.xlane.f32.xlu0 %v399
        %v452 = vpop.xlane.xlu0 %451
        %453 = vadd.xlane.f32.xlu0 %v400
        %v454 = vpop.xlane.xlu0 %453
        %455 = vadd.xlane.f32.xlu0 %v401
        %v456 = vpop.xlane.xlu0 %455
        %457 = vadd.xlane.f32.xlu0 %v402
        %v458 = vpop.xlane.xlu0 %457
        %459 = vadd.xlane.f32.xlu0 %v403
        %v460 = vpop.xlane.xlu0 %459
        %461 = vadd.xlane.f32.xlu0 %v404
        %v462 = vpop.xlane.xlu0 %461
        %463 = vadd.xlane.f32.xlu0 %v405
        %v464 = vpop.xlane.xlu0 %463
        %465 = vadd.xlane.f32.xlu0 %v406
        %v466 = vpop.xlane.xlu0 %465
        %467 = vadd.xlane.f32.xlu0 %v407
        %v468 = vpop.xlane.xlu0 %467
        %469 = vadd.xlane.f32.xlu0 %v408
        %v470 = vpop.xlane.xlu0 %469
        %471 = vadd.xlane.f32.xlu0 %v409
        %v472 = vpop.xlane.xlu0 %471
        %473 = vadd.xlane.f32.xlu0 %v410
        %v474 = vpop.xlane.xlu0 %473
        %v475 = vrcp.pop 128.0
        %v476 = vmul.f32 %v412, %v475
        %v477 = vmul.f32 %v414, %v475
        %v478 = vmul.f32 %v416, %v475
        %v479 = vmul.f32 %v418, %v475
        %v480 = vmul.f32 %v420, %v475
        %v481 = vmul.f32 %v422, %v475
        %v482 = vmul.f32 %v424, %v475
        %v483 = vmul.f32 %v426, %v475
        %v484 = vmul.f32 %v428, %v475
        %v485 = vmul.f32 %v430, %v475
        %v486 = vmul.f32 %v432, %v475
        %v487 = vmul.f32 %v434, %v475
        %v488 = vmul.f32 %v436, %v475
        %v489 = vmul.f32 %v438, %v475
        %v490 = vmul.f32 %v440, %v475
        %v491 = vmul.f32 %v442, %v475
        %v492 = vmul.f32 %v444, %v475
        %v493 = vmul.f32 %v446, %v475
        %v494 = vmul.f32 %v448, %v475
        %v495 = vmul.f32 %v450, %v475
        %v496 = vmul.f32 %v452, %v475
        %v497 = vmul.f32 %v454, %v475
        %v498 = vmul.f32 %v456, %v475
        %v499 = vmul.f32 %v458, %v475
        %v500 = vmul.f32 %v460, %v475
        %v501 = vmul.f32 %v462, %v475
        %v502 = vmul.f32 %v464, %v475
        %v503 = vmul.f32 %v466, %v475
        %v504 = vmul.f32 %v468, %v475
        %v505 = vmul.f32 %v470, %v475
        %v506 = vmul.f32 %v472, %v475
        %v507 = vmul.f32 %v474, %v475
        %v508 = vsub.f32 %v379, %v476
        %v509 = vsub.f32 %v380, %v477
        %v510 = vsub.f32 %v381, %v478
        %v511 = vsub.f32 %v382, %v479
        %v512 = vsub.f32 %v383, %v480
        %v513 = vsub.f32 %v384, %v481
        %v514 = vsub.f32 %v385, %v482
        %v515 = vsub.f32 %v386, %v483
        %v516 = vsub.f32 %v387, %v484
        %v517 = vsub.f32 %v388, %v485
        %v518 = vsub.f32 %v389, %v486
        %v519 = vsub.f32 %v390, %v487
        %v520 = vsub.f32 %v391, %v488
        %v521 = vsub.f32 %v392, %v489
        %v522 = vsub.f32 %v393, %v490
        %v523 = vsub.f32 %v394, %v491
        %v524 = vsub.f32 %v395, %v492
        %v525 = vsub.f32 %v396, %v493
        %v526 = vsub.f32 %v397, %v494
        %v527 = vsub.f32 %v398, %v495
        %v528 = vsub.f32 %v399, %v496
        %v529 = vsub.f32 %v400, %v497
        %v530 = vsub.f32 %v401, %v498
        %v531 = vsub.f32 %v402, %v499
        %v532 = vsub.f32 %v403, %v500
        %v533 = vsub.f32 %v404, %v501
        %v534 = vsub.f32 %v405, %v502
        %v535 = vsub.f32 %v406, %v503
        %v536 = vsub.f32 %v407, %v504
        %v537 = vsub.f32 %v408, %v505
        %v538 = vsub.f32 %v409, %v506
        %v539 = vsub.f32 %v410, %v507
        %v540 = vmul.f32 %v508, %v508
        %v541 = vmul.f32 %v509, %v509
        %v542 = vmul.f32 %v510, %v510
        %v543 = vmul.f32 %v511, %v511
        %v544 = vmul.f32 %v512, %v512
        %v545 = vmul.f32 %v513, %v513
        %v546 = vmul.f32 %v514, %v514
        %v547 = vmul.f32 %v515, %v515
        %v548 = vmul.f32 %v516, %v516
        %v549 = vmul.f32 %v517, %v517
        %v550 = vmul.f32 %v518, %v518
        %v551 = vmul.f32 %v519, %v519
        %v552 = vmul.f32 %v520, %v520
        %v553 = vmul.f32 %v521, %v521
        %v554 = vmul.f32 %v522, %v522
        %v555 = vmul.f32 %v523, %v523
        %v556 = vmul.f32 %v524, %v524
        %v557 = vmul.f32 %v525, %v525
        %v558 = vmul.f32 %v526, %v526
        %v559 = vmul.f32 %v527, %v527
        %v560 = vmul.f32 %v528, %v528
        %v561 = vmul.f32 %v529, %v529
        %v562 = vmul.f32 %v530, %v530
        %v563 = vmul.f32 %v531, %v531
        %v564 = vmul.f32 %v532, %v532
        %v565 = vmul.f32 %v533, %v533
        %v566 = vmul.f32 %v534, %v534
        %v567 = vmul.f32 %v535, %v535
        %v568 = vmul.f32 %v536, %v536
        %v569 = vmul.f32 %v537, %v537
        %v570 = vmul.f32 %v538, %v538
        %v571 = vmul.f32 %v539, %v539
        %572 = vadd.xlane.f32.xlu0 %v540
        %v573 = vpop.xlane.xlu0 %572
        %574 = vadd.xlane.f32.xlu0 %v541
        %v575 = vpop.xlane.xlu0 %574
        %576 = vadd.xlane.f32.xlu0 %v542
        %v577 = vpop.xlane.xlu0 %576
        %578 = vadd.xlane.f32.xlu0 %v543
        %v579 = vpop.xlane.xlu0 %578
        %580 = vadd.xlane.f32.xlu0 %v544
        %v581 = vpop.xlane.xlu0 %580
        %582 = vadd.xlane.f32.xlu0 %v545
        %v583 = vpop.xlane.xlu0 %582
        %584 = vadd.xlane.f32.xlu0 %v546
        %v585 = vpop.xlane.xlu0 %584
        %586 = vadd.xlane.f32.xlu0 %v547
        %v587 = vpop.xlane.xlu0 %586
        %588 = vadd.xlane.f32.xlu0 %v548
        %v589 = vpop.xlane.xlu0 %588
        %590 = vadd.xlane.f32.xlu0 %v549
        %v591 = vpop.xlane.xlu0 %590
        %592 = vadd.xlane.f32.xlu0 %v550
        %v593 = vpop.xlane.xlu0 %592
        %594 = vadd.xlane.f32.xlu0 %v551
        %v595 = vpop.xlane.xlu0 %594
        %596 = vadd.xlane.f32.xlu0 %v552
        %v597 = vpop.xlane.xlu0 %596
        %598 = vadd.xlane.f32.xlu0 %v553
        %v599 = vpop.xlane.xlu0 %598
        %600 = vadd.xlane.f32.xlu0 %v554
        %v601 = vpop.xlane.xlu0 %600
        %602 = vadd.xlane.f32.xlu0 %v555
        %v603 = vpop.xlane.xlu0 %602
        %604 = vadd.xlane.f32.xlu0 %v556
        %v605 = vpop.xlane.xlu0 %604
        %606 = vadd.xlane.f32.xlu0 %v557
        %v607 = vpop.xlane.xlu0 %606
        %608 = vadd.xlane.f32.xlu0 %v558
        %v609 = vpop.xlane.xlu0 %608
        %610 = vadd.xlane.f32.xlu0 %v559
        %v611 = vpop.xlane.xlu0 %610
        %612 = vadd.xlane.f32.xlu0 %v560
        %v613 = vpop.xlane.xlu0 %612
        %614 = vadd.xlane.f32.xlu0 %v561
        %v615 = vpop.xlane.xlu0 %614
        %616 = vadd.xlane.f32.xlu0 %v562
        %v617 = vpop.xlane.xlu0 %616
        %618 = vadd.xlane.f32.xlu0 %v563
        %v619 = vpop.xlane.xlu0 %618
        %620 = vadd.xlane.f32.xlu0 %v564
        %v621 = vpop.xlane.xlu0 %620
        %622 = vadd.xlane.f32.xlu0 %v565
        %v623 = vpop.xlane.xlu0 %622
        %624 = vadd.xlane.f32.xlu0 %v566
        %v625 = vpop.xlane.xlu0 %624
        %626 = vadd.xlane.f32.xlu0 %v567
        %v627 = vpop.xlane.xlu0 %626
        %628 = vadd.xlane.f32.xlu0 %v568
        %v629 = vpop.xlane.xlu0 %628
        %630 = vadd.xlane.f32.xlu0 %v569
        %v631 = vpop.xlane.xlu0 %630
        %632 = vadd.xlane.f32.xlu0 %v570
        %v633 = vpop.xlane.xlu0 %632
        %634 = vadd.xlane.f32.xlu0 %v571
        %v635 = vpop.xlane.xlu0 %634
        %v636 = vmul.f32 %v573, %v475
        %v637 = vmul.f32 %v575, %v475
        %v638 = vmul.f32 %v577, %v475
        %v639 = vmul.f32 %v579, %v475
        %v640 = vmul.f32 %v581, %v475
        %v641 = vmul.f32 %v583, %v475
        %v642 = vmul.f32 %v585, %v475
        %v643 = vmul.f32 %v587, %v475
        %v644 = vmul.f32 %v589, %v475
        %v645 = vmul.f32 %v591, %v475
        %v646 = vmul.f32 %v593, %v475
        %v647 = vmul.f32 %v595, %v475
        %v648 = vmul.f32 %v597, %v475
        %v649 = vmul.f32 %v599, %v475
        %v650 = vmul.f32 %v601, %v475
        %v651 = vmul.f32 %v603, %v475
        %v652 = vmul.f32 %v605, %v475
        %v653 = vmul.f32 %v607, %v475
        %v654 = vmul.f32 %v609, %v475
        %v655 = vmul.f32 %v611, %v475
        %v656 = vmul.f32 %v613, %v475
        %v657 = vmul.f32 %v615, %v475
        %v658 = vmul.f32 %v617, %v475
        %v659 = vmul.f32 %v619, %v475
        %v660 = vmul.f32 %v621, %v475
        %v661 = vmul.f32 %v623, %v475
        %v662 = vmul.f32 %v625, %v475
        %v663 = vmul.f32 %v627, %v475
        %v664 = vmul.f32 %v629, %v475
        %v665 = vmul.f32 %v631, %v475
        %v666 = vmul.f32 %v633, %v475
        %v667 = vmul.f32 %v635, %v475
        %v668 = vadd.f32 %v636, 1e-05
        %v669 = vadd.f32 %v637, 1e-05
        %v670 = vadd.f32 %v638, 1e-05
        %v671 = vadd.f32 %v639, 1e-05
        %v672 = vadd.f32 %v640, 1e-05
        %v673 = vadd.f32 %v641, 1e-05
        %v674 = vadd.f32 %v642, 1e-05
        %v675 = vadd.f32 %v643, 1e-05
        %v676 = vadd.f32 %v644, 1e-05
        %v677 = vadd.f32 %v645, 1e-05
        %v678 = vadd.f32 %v646, 1e-05
        %v679 = vadd.f32 %v647, 1e-05
        %v680 = vadd.f32 %v648, 1e-05
        %v681 = vadd.f32 %v649, 1e-05
        %v682 = vadd.f32 %v650, 1e-05
        %v683 = vadd.f32 %v651, 1e-05
        %v684 = vadd.f32 %v652, 1e-05
        %v685 = vadd.f32 %v653, 1e-05
        %v686 = vadd.f32 %v654, 1e-05
        %v687 = vadd.f32 %v655, 1e-05
        %v688 = vadd.f32 %v656, 1e-05
        %v689 = vadd.f32 %v657, 1e-05
        %v690 = vadd.f32 %v658, 1e-05
        %v691 = vadd.f32 %v659, 1e-05
        %v692 = vadd.f32 %v660, 1e-05
        %v693 = vadd.f32 %v661, 1e-05
        %v694 = vadd.f32 %v662, 1e-05
        %v695 = vadd.f32 %v663, 1e-05
        %v696 = vadd.f32 %v664, 1e-05
        %v697 = vadd.f32 %v665, 1e-05
        %v698 = vadd.f32 %v666, 1e-05
        %v699 = vadd.f32 %v667, 1e-05
        %v700 = vrsqrt.pop %v668
        %v701 = vrsqrt.pop %v669
        %v702 = vrsqrt.pop %v670
        %v703 = vrsqrt.pop %v671
        %v704 = vrsqrt.pop %v672
        %v705 = vrsqrt.pop %v673
        %v706 = vrsqrt.pop %v674
        %v707 = vrsqrt.pop %v675
        %v708 = vrsqrt.pop %v676
        %v709 = vrsqrt.pop %v677
        %v710 = vrsqrt.pop %v678
        %v711 = vrsqrt.pop %v679
        %v712 = vrsqrt.pop %v680
        %v713 = vrsqrt.pop %v681
        %v714 = vrsqrt.pop %v682
        %v715 = vrsqrt.pop %v683
        %v716 = vrsqrt.pop %v684
        %v717 = vrsqrt.pop %v685
        %v718 = vrsqrt.pop %v686
        %v719 = vrsqrt.pop %v687
        %v720 = vrsqrt.pop %v688
        %v721 = vrsqrt.pop %v689
        %v722 = vrsqrt.pop %v690
        %v723 = vrsqrt.pop %v691
        %v724 = vrsqrt.pop %v692
        %v725 = vrsqrt.pop %v693
        %v726 = vrsqrt.pop %v694
        %v727 = vrsqrt.pop %v695
        %v728 = vrsqrt.pop %v696
        %v729 = vrsqrt.pop %v697
        %v730 = vrsqrt.pop %v698
        %v731 = vrsqrt.pop %v699
        %v732 = vmul.f32 %v508, %v700
        %v733 = vmul.f32 %v509, %v701
        %v734 = vmul.f32 %v510, %v702
        %v735 = vmul.f32 %v511, %v703
        %v736 = vmul.f32 %v512, %v704
        %v737 = vmul.f32 %v513, %v705
        %v738 = vmul.f32 %v514, %v706
        %v739 = vmul.f32 %v515, %v707
        %v740 = vmul.f32 %v516, %v708
        %v741 = vmul.f32 %v517, %v709
        %v742 = vmul.f32 %v518, %v710
        %v743 = vmul.f32 %v519, %v711
        %v744 = vmul.f32 %v520, %v712
        %v745 = vmul.f32 %v521, %v713
        %v746 = vmul.f32 %v522, %v714
        %v747 = vmul.f32 %v523, %v715
        %v748 = vmul.f32 %v524, %v716
        %v749 = vmul.f32 %v525, %v717
        %v750 = vmul.f32 %v526, %v718
        %v751 = vmul.f32 %v527, %v719
        %v752 = vmul.f32 %v528, %v720
        %v753 = vmul.f32 %v529, %v721
        %v754 = vmul.f32 %v530, %v722
        %v755 = vmul.f32 %v531, %v723
        %v756 = vmul.f32 %v532, %v724
        %v757 = vmul.f32 %v533, %v725
        %v758 = vmul.f32 %v534, %v726
        %v759 = vmul.f32 %v535, %v727
        %v760 = vmul.f32 %v536, %v728
        %v761 = vmul.f32 %v537, %v729
        %v762 = vmul.f32 %v538, %v730
        %v763 = vmul.f32 %v539, %v731
        %v764 = vld [vmem:[#allocation5] sm:$0x1]
        %v766 = vlaneseq
        %v767 = vshrl.u32 %v766, 7
        %v768 = vsub.s32 0, %v767
        %v769 = vrot.slane %v764, %v768
        %v771 = vmul.f32 %v732, %v769
        %v772 = vmul.f32 %v733, %v769
        %v773 = vmul.f32 %v734, %v769
        %v774 = vmul.f32 %v735, %v769
        %v775 = vmul.f32 %v736, %v769
        %v776 = vmul.f32 %v737, %v769
        %v777 = vmul.f32 %v738, %v769
        %v778 = vmul.f32 %v739, %v769
        %v779 = vmul.f32 %v740, %v769
        %v780 = vmul.f32 %v741, %v769
        %v781 = vmul.f32 %v742, %v769
        %v782 = vmul.f32 %v743, %v769
        %v783 = vmul.f32 %v744, %v769
        %v784 = vmul.f32 %v745, %v769
        %v785 = vmul.f32 %v746, %v769
        %v786 = vmul.f32 %v747, %v769
        %v787 = vmul.f32 %v748, %v769
        %v788 = vmul.f32 %v749, %v769
        %v789 = vmul.f32 %v750, %v769
        %v790 = vmul.f32 %v751, %v769
        %v791 = vmul.f32 %v752, %v769
        %v792 = vmul.f32 %v753, %v769
        %v793 = vmul.f32 %v754, %v769
        %v794 = vmul.f32 %v755, %v769
        %v795 = vmul.f32 %v756, %v769
        %v796 = vmul.f32 %v757, %v769
        %v797 = vmul.f32 %v758, %v769
        %v798 = vmul.f32 %v759, %v769
        %v799 = vmul.f32 %v760, %v769
        %v800 = vmul.f32 %v761, %v769
        %v801 = vmul.f32 %v762, %v769
        %v802 = vmul.f32 %v763, %v769
        %v803 = vld [vmem:[#allocation7] sm:$0x1]
        %v805 = vlaneseq
        %v806 = vshrl.u32 %v805, 7
        %v807 = vsub.s32 0, %v806
        %v808 = vrot.slane %v803, %v807
        %v810 = vadd.f32 %v771, %v808
        %v811 = vadd.f32 %v772, %v808
        %v812 = vadd.f32 %v773, %v808
        %v813 = vadd.f32 %v774, %v808
        %v814 = vadd.f32 %v775, %v808
        %v815 = vadd.f32 %v776, %v808
        %v816 = vadd.f32 %v777, %v808
        %v817 = vadd.f32 %v778, %v808
        %v818 = vadd.f32 %v779, %v808
        %v819 = vadd.f32 %v780, %v808
        %v820 = vadd.f32 %v781, %v808
        %v821 = vadd.f32 %v782, %v808
        %v822 = vadd.f32 %v783, %v808
        %v823 = vadd.f32 %v784, %v808
        %v824 = vadd.f32 %v785, %v808
        %v825 = vadd.f32 %v786, %v808
        %v826 = vadd.f32 %v787, %v808
        %v827 = vadd.f32 %v788, %v808
        %v828 = vadd.f32 %v789, %v808
        %v829 = vadd.f32 %v790, %v808
        %v830 = vadd.f32 %v791, %v808
        %v831 = vadd.f32 %v792, %v808
        %v832 = vadd.f32 %v793, %v808
        %v833 = vadd.f32 %v794, %v808
        %v834 = vadd.f32 %v795, %v808
        %v835 = vadd.f32 %v796, %v808
        %v836 = vadd.f32 %v797, %v808
        %v837 = vadd.f32 %v798, %v808
        %v838 = vadd.f32 %v799, %v808
        %v839 = vadd.f32 %v800, %v808
        %v840 = vadd.f32 %v801, %v808
        %v841 = vadd.f32 %v802, %v808
        %v842 = vpack.c.bf16 %v811, %v810
        %v843 = vpack.c.bf16 %v813, %v812
        %v844 = vpack.c.bf16 %v815, %v814
        %v845 = vpack.c.bf16 %v817, %v816
        %v846 = vpack.c.bf16 %v819, %v818
        %v847 = vpack.c.bf16 %v821, %v820
        %v848 = vpack.c.bf16 %v823, %v822
        %v849 = vpack.c.bf16 %v825, %v824
        %v850 = vpack.c.bf16 %v827, %v826
        %v851 = vpack.c.bf16 %v829, %v828
        %v852 = vpack.c.bf16 %v831, %v830
        %v853 = vpack.c.bf16 %v833, %v832
        %v854 = vpack.c.bf16 %v835, %v834
        %v855 = vpack.c.bf16 %v837, %v836
        %v856 = vpack.c.bf16 %v839, %v838
        %v857 = vpack.c.bf16 %v841, %v840
        %v858 = vld [vmem:[#allocation8] sm:$0xff]
        %v859 = vld [vmem:[#allocation8 + $0x8] sm:$0xff]
        %v860 = vld [vmem:[#allocation8 + $0x10] sm:$0xff]
        %v861 = vld [vmem:[#allocation8 + $0x18] sm:$0xff]
        %v862 = vld [vmem:[#allocation8 + $0x20] sm:$0xff]
        %v863 = vld [vmem:[#allocation8 + $0x28] sm:$0xff]
        %v864 = vld [vmem:[#allocation8 + $0x30] sm:$0xff]
        %v865 = vld [vmem:[#allocation8 + $0x38] sm:$0xff]
        %v866 = vld [vmem:[#allocation8 + $0x40] sm:$0xff]
        %v867 = vld [vmem:[#allocation8 + $0x48] sm:$0xff]
        %v868 = vld [vmem:[#allocation8 + $0x50] sm:$0xff]
        %v869 = vld [vmem:[#allocation8 + $0x58] sm:$0xff]
        %v870 = vld [vmem:[#allocation8 + $0x60] sm:$0xff]
        %v871 = vld [vmem:[#allocation8 + $0x68] sm:$0xff]
        %v872 = vld [vmem:[#allocation8 + $0x70] sm:$0xff]
        %v873 = vld [vmem:[#allocation8 + $0x78] sm:$0xff]
        %v874 = vld [vmem:[#allocation10] sm:$0x3]
        %v876 = vlaneseq
        %v877 = vshrl.u32 %v876, 7
        %v878 = vsub.s32 0, %v877
        %v879 = vrot.slane %v874, %v878
        %v880 = vlaneseq
        %v881 = vshrl.u32 %v880, 7
        %v882 = vsub.s32 1, %v881
        %v883 = vrot.slane %v874, %v882
        %v902 = vunpack.c.l.b16 %v858
        %v903 = vunpack.c.h.b16 %v858
        %v904 = vunpack.c.l.b16 %v859
        %v905 = vunpack.c.h.b16 %v859
        %v906 = vunpack.c.l.b16 %v860
        %v907 = vunpack.c.h.b16 %v860
        %v908 = vunpack.c.l.b16 %v861
        %v909 = vunpack.c.h.b16 %v861
        %v910 = vunpack.c.l.b16 %v862
        %v911 = vunpack.c.h.b16 %v862
        %v912 = vunpack.c.l.b16 %v863
        %v913 = vunpack.c.h.b16 %v863
        %v914 = vunpack.c.l.b16 %v864
        %v915 = vunpack.c.h.b16 %v864
        %v916 = vunpack.c.l.b16 %v865
        %v917 = vunpack.c.h.b16 %v865
        %v918 = vunpack.c.l.b16 %v866
        %v919 = vunpack.c.h.b16 %v866
        %v920 = vunpack.c.l.b16 %v867
        %v921 = vunpack.c.h.b16 %v867
        %v922 = vunpack.c.l.b16 %v868
        %v923 = vunpack.c.h.b16 %v868
        %v924 = vunpack.c.l.b16 %v869
        %v925 = vunpack.c.h.b16 %v869
        %v926 = vunpack.c.l.b16 %v870
        %v927 = vunpack.c.h.b16 %v870
        %v928 = vunpack.c.l.b16 %v871
        %v929 = vunpack.c.h.b16 %v871
        %v930 = vunpack.c.l.b16 %v872
        %v931 = vunpack.c.h.b16 %v872
        %v932 = vunpack.c.l.b16 %v873
        %v933 = vunpack.c.h.b16 %v873
        %v934 = vpack.c.b16 %v904, %v902
        %v935 = vpack.c.b16 %v905, %v903
        %v936 = vpack.c.b16 %v908, %v906
        %v937 = vpack.c.b16 %v909, %v907
        %v938 = vpack.c.b16 %v912, %v910
        %v939 = vpack.c.b16 %v913, %v911
        %v940 = vpack.c.b16 %v916, %v914
        %v941 = vpack.c.b16 %v917, %v915
        %v942 = vpack.c.b16 %v920, %v918
        %v943 = vpack.c.b16 %v921, %v919
        %v944 = vpack.c.b16 %v924, %v922
        %v945 = vpack.c.b16 %v925, %v923
        %v946 = vpack.c.b16 %v928, %v926
        %v947 = vpack.c.b16 %v929, %v927
        %v948 = vpack.c.b16 %v932, %v930
        %v949 = vpack.c.b16 %v933, %v931
        %966 = vmatprep.subr.bf16.mxu0 %v935
        %967 = vmatpush1.bf16.msra.mxu0 %v934
        %968 = vmatprep.subr.bf16.mxu0 %v937
        %969 = vmatpush1.bf16.msra.mxu0 %v936
        %970 = vmatprep.subr.bf16.mxu0 %v939
        %971 = vmatpush1.bf16.msra.mxu0 %v938
        %972 = vmatprep.subr.bf16.mxu0 %v941
        %973 = vmatpush1.bf16.msra.mxu0 %v940
        %974 = vmatprep.subr.bf16.mxu0 %v943
        %975 = vmatpush1.bf16.msra.mxu0 %v942
        %976 = vmatprep.subr.bf16.mxu0 %v945
        %977 = vmatpush1.bf16.msra.mxu0 %v944
        %978 = vmatprep.subr.bf16.mxu0 %v947
        %979 = vmatpush1.bf16.msra.mxu0 %v946
        %980 = vmatprep.subr.bf16.mxu0 %v949
        %981 = vmatpush1.bf16.msra.mxu0 %v948
        %982 = vmatprep.subr.bf16.mxu0 0
        %983 = vmatpush1.bf16.msra.mxu0 0
        %984 = vmatprep.subr.bf16.mxu0 0
        %985 = vmatpush1.bf16.msra.mxu0 0
        %986 = vmatprep.subr.bf16.mxu0 0
        %987 = vmatpush1.bf16.msra.mxu0 0
        %988 = vmatprep.subr.bf16.mxu0 0
        %989 = vmatpush1.bf16.msra.mxu0 0
        %990 = vmatprep.subr.bf16.mxu0 0
        %991 = vmatpush1.bf16.msra.mxu0 0
        %992 = vmatprep.subr.bf16.mxu0 0
        %993 = vmatpush1.bf16.msra.mxu0 0
        %994 = vmatprep.subr.bf16.mxu0 0
        %995 = vmatpush1.bf16.msra.mxu0 0
        %996 = vmatprep.subr.bf16.mxu0 0
        %997 = vmatpush1.bf16.msra.mxu0 0
        %998 = vmatprep.mubr.bf16.mxu0 0
        %999 = vmatmul.mubr.bf16.gmra.mrb[0].mxu0 %v842
        %v1000 = vpop.f32.mrb[0].mxu0
        %v1001 = vadd.f32 %v879, %v1000
        %v1002 = vpop.f32.mrb[0].mxu0
        %v1003 = vadd.f32 %v883, %v1002
        %v1004 = vpop.f32.mrb[0].mxu0
        %v1005 = vadd.f32 %v879, %v1004
        %v1006 = vpop.f32.mrb[0].mxu0
        %v1007 = vadd.f32 %v883, %v1006
        %1008 = vmatprep.mubr.bf16.mxu0 0
        %1009 = vmatmul.mubr.bf16.gmra.mrb[0].mxu0 %v843
        %v1010 = vpop.f32.mrb[0].mxu0
        %v1011 = vadd.f32 %v879, %v1010
        %v1012 = vpop.f32.mrb[0].mxu0
        %v1013 = vadd.f32 %v883, %v1012
        %v1014 = vpop.f32.mrb[0].mxu0
        %v1015 = vadd.f32 %v879, %v1014
        %v1016 = vpop.f32.mrb[0].mxu0
        %v1017 = vadd.f32 %v883, %v1016
        %1018 = vmatprep.mubr.bf16.mxu0 0
        %1019 = vmatmul.mubr.bf16.gmra.mrb[0].mxu0 %v844
        %v1020 = vpop.f32.mrb[0].mxu0
        %v1021 = vadd.f32 %v879, %v1020
        %v1022 = vpop.f32.mrb[0].mxu0
        %v1023 = vadd.f32 %v883, %v1022
        %v1024 = vpop.f32.mrb[0].mxu0
        %v1025 = vadd.f32 %v879, %v1024
        %v1026 = vpop.f32.mrb[0].mxu0
        %v1027 = vadd.f32 %v883, %v1026
        %1028 = vmatprep.mubr.bf16.mxu0 0
        %1029 = vmatmul.mubr.bf16.gmra.mrb[0].mxu0 %v845
        %v1030 = vpop.f32.mrb[0].mxu0
        %v1031 = vadd.f32 %v879, %v1030
        %v1032 = vpop.f32.mrb[0].mxu0
        %v1033 = vadd.f32 %v883, %v1032
        %v1034 = vpop.f32.mrb[0].mxu0
        %v1035 = vadd.f32 %v879, %v1034
        %v1036 = vpop.f32.mrb[0].mxu0
        %v1037 = vadd.f32 %v883, %v1036
        %1038 = vmatprep.mubr.bf16.mxu0 0
        %1039 = vmatmul.mubr.bf16.gmra.mrb[0].mxu0 %v846
        %v1040 = vpop.f32.mrb[0].mxu0
        %v1041 = vadd.f32 %v879, %v1040
        %v1042 = vpop.f32.mrb[0].mxu0
        %v1043 = vadd.f32 %v883, %v1042
        %v1044 = vpop.f32.mrb[0].mxu0
        %v1045 = vadd.f32 %v879, %v1044
        %v1046 = vpop.f32.mrb[0].mxu0
        %v1047 = vadd.f32 %v883, %v1046
        %1048 = vmatprep.mubr.bf16.mxu0 0
        %1049 = vmatmul.mubr.bf16.gmra.mrb[0].mxu0 %v847
        %v1050 = vpop.f32.mrb[0].mxu0
        %v1051 = vadd.f32 %v879, %v1050
        %v1052 = vpop.f32.mrb[0].mxu0
        %v1053 = vadd.f32 %v883, %v1052
        %v1054 = vpop.f32.mrb[0].mxu0
        %v1055 = vadd.f32 %v879, %v1054
        %v1056 = vpop.f32.mrb[0].mxu0
        %v1057 = vadd.f32 %v883, %v1056
        %1058 = vmatprep.mubr.bf16.mxu0 0
        %1059 = vmatmul.mubr.bf16.gmra.mrb[0].mxu0 %v848
        %v1060 = vpop.f32.mrb[0].mxu0
        %v1061 = vadd.f32 %v879, %v1060
        %v1062 = vpop.f32.mrb[0].mxu0
        %v1063 = vadd.f32 %v883, %v1062
        %v1064 = vpop.f32.mrb[0].mxu0
        %v1065 = vadd.f32 %v879, %v1064
        %v1066 = vpop.f32.mrb[0].mxu0
        %v1067 = vadd.f32 %v883, %v1066
        %1068 = vmatprep.mubr.bf16.mxu0 0
        %1069 = vmatmul.mubr.bf16.gmra.mrb[0].mxu0 %v849
        %v1070 = vpop.f32.mrb[0].mxu0
        %v1071 = vadd.f32 %v879, %v1070
        %v1072 = vpop.f32.mrb[0].mxu0
        %v1073 = vadd.f32 %v883, %v1072
        %v1074 = vpop.f32.mrb[0].mxu0
        %v1075 = vadd.f32 %v879, %v1074
        %v1076 = vpop.f32.mrb[0].mxu0
        %v1077 = vadd.f32 %v883, %v1076
        %1078 = vmatprep.mubr.bf16.mxu0 0
        %1079 = vmatmul.mubr.bf16.gmra.mrb[0].mxu0 %v850
        %v1080 = vpop.f32.mrb[0].mxu0
        %v1081 = vadd.f32 %v879, %v1080
        %v1082 = vpop.f32.mrb[0].mxu0
        %v1083 = vadd.f32 %v883, %v1082
        %v1084 = vpop.f32.mrb[0].mxu0
        %v1085 = vadd.f32 %v879, %v1084
        %v1086 = vpop.f32.mrb[0].mxu0
        %v1087 = vadd.f32 %v883, %v1086
        %1088 = vmatprep.mubr.bf16.mxu0 0
        %1089 = vmatmul.mubr.bf16.gmra.mrb[0].mxu0 %v851
        %v1090 = vpop.f32.mrb[0].mxu0
        %v1091 = vadd.f32 %v879, %v1090
        %v1092 = vpop.f32.mrb[0].mxu0
        %v1093 = vadd.f32 %v883, %v1092
        %v1094 = vpop.f32.mrb[0].mxu0
        %v1095 = vadd.f32 %v879, %v1094
        %v1096 = vpop.f32.mrb[0].mxu0
        %v1097 = vadd.f32 %v883, %v1096
        %1098 = vmatprep.mubr.bf16.mxu0 0
        %1099 = vmatmul.mubr.bf16.gmra.mrb[0].mxu0 %v852
        %v1100 = vpop.f32.mrb[0].mxu0
        %v1101 = vadd.f32 %v879, %v1100
        %v1102 = vpop.f32.mrb[0].mxu0
        %v1103 = vadd.f32 %v883, %v1102
        %v1104 = vpop.f32.mrb[0].mxu0
        %v1105 = vadd.f32 %v879, %v1104
        %v1106 = vpop.f32.mrb[0].mxu0
        %v1107 = vadd.f32 %v883, %v1106
        %1108 = vmatprep.mubr.bf16.mxu0 0
        %1109 = vmatmul.mubr.bf16.gmra.mrb[0].mxu0 %v853
        %v1110 = vpop.f32.mrb[0].mxu0
        %v1111 = vadd.f32 %v879, %v1110
        %v1112 = vpop.f32.mrb[0].mxu0
        %v1113 = vadd.f32 %v883, %v1112
        %v1114 = vpop.f32.mrb[0].mxu0
        %v1115 = vadd.f32 %v879, %v1114
        %v1116 = vpop.f32.mrb[0].mxu0
        %v1117 = vadd.f32 %v883, %v1116
        %1118 = vmatprep.mubr.bf16.mxu0 0
        %1119 = vmatmul.mubr.bf16.gmra.mrb[0].mxu0 %v854
        %v1120 = vpop.f32.mrb[0].mxu0
        %v1121 = vadd.f32 %v879, %v1120
        %v1122 = vpop.f32.mrb[0].mxu0
        %v1123 = vadd.f32 %v883, %v1122
        %v1124 = vpop.f32.mrb[0].mxu0
        %v1125 = vadd.f32 %v879, %v1124
        %v1126 = vpop.f32.mrb[0].mxu0
        %v1127 = vadd.f32 %v883, %v1126
        %1128 = vmatprep.mubr.bf16.mxu0 0
        %1129 = vmatmul.mubr.bf16.gmra.mrb[0].mxu0 %v855
        %v1130 = vpop.f32.mrb[0].mxu0
        %v1131 = vadd.f32 %v879, %v1130
        %v1132 = vpop.f32.mrb[0].mxu0
        %v1133 = vadd.f32 %v883, %v1132
        %v1134 = vpop.f32.mrb[0].mxu0
        %v1135 = vadd.f32 %v879, %v1134
        %v1136 = vpop.f32.mrb[0].mxu0
        %v1137 = vadd.f32 %v883, %v1136
        %1138 = vmatprep.mubr.bf16.mxu0 0
        %1139 = vmatmul.mubr.bf16.gmra.mrb[0].mxu0 %v856
        %v1140 = vpop.f32.mrb[0].mxu0
        %v1141 = vadd.f32 %v879, %v1140
        %v1142 = vpop.f32.mrb[0].mxu0
        %v1143 = vadd.f32 %v883, %v1142
        %v1144 = vpop.f32.mrb[0].mxu0
        %v1145 = vadd.f32 %v879, %v1144
        %v1146 = vpop.f32.mrb[0].mxu0
        %v1147 = vadd.f32 %v883, %v1146
        %1148 = vmatprep.mubr.bf16.mxu0 0
        %1149 = vmatmul.mubr.bf16.gmra.mrb[0].mxu0 %v857
        %v1150 = vpop.f32.mrb[0].mxu0
        %v1151 = vadd.f32 %v879, %v1150
        %v1152 = vpop.f32.mrb[0].mxu0
        %v1153 = vadd.f32 %v883, %v1152
        %v1154 = vpop.f32.mrb[0].mxu0
        %v1155 = vadd.f32 %v879, %v1154
        %v1156 = vpop.f32.mrb[0].mxu0
        %v1157 = vadd.f32 %v883, %v1156
        %1158 = vdwg.mxu0
        %v1159 = vmul.f32 %v1001, 0.5
        %v1160 = vmul.f32 %v1003, 0.5
        %v1161 = vmul.f32 %v1005, 0.5
        %v1162 = vmul.f32 %v1007, 0.5
        %v1163 = vmul.f32 %v1011, 0.5
        %v1164 = vmul.f32 %v1013, 0.5
        %v1165 = vmul.f32 %v1015, 0.5
        %v1166 = vmul.f32 %v1017, 0.5
        %v1167 = vmul.f32 %v1021, 0.5
        %v1168 = vmul.f32 %v1023, 0.5
        %v1169 = vmul.f32 %v1025, 0.5
        %v1170 = vmul.f32 %v1027, 0.5
        %v1171 = vmul.f32 %v1031, 0.5
        %v1172 = vmul.f32 %v1033, 0.5
        %v1173 = vmul.f32 %v1035, 0.5
        %v1174 = vmul.f32 %v1037, 0.5
        %v1175 = vmul.f32 %v1041, 0.5
        %v1176 = vmul.f32 %v1043, 0.5
        %v1177 = vmul.f32 %v1045, 0.5
        %v1178 = vmul.f32 %v1047, 0.5
        %v1179 = vmul.f32 %v1051, 0.5
        %v1180 = vmul.f32 %v1053, 0.5
        %v1181 = vmul.f32 %v1055, 0.5
        %v1182 = vmul.f32 %v1057, 0.5
        %v1183 = vmul.f32 %v1061, 0.5
        %v1184 = vmul.f32 %v1063, 0.5
        %v1185 = vmul.f32 %v1065, 0.5
        %v1186 = vmul.f32 %v1067, 0.5
        %v1187 = vmul.f32 %v1071, 0.5
        %v1188 = vmul.f32 %v1073, 0.5
        %v1189 = vmul.f32 %v1075, 0.5
        %v1190 = vmul.f32 %v1077, 0.5
        %v1191 = vmul.f32 %v1081, 0.5
        %v1192 = vmul.f32 %v1083, 0.5
        %v1193 = vmul.f32 %v1085, 0.5
        %v1194 = vmul.f32 %v1087, 0.5
        %v1195 = vmul.f32 %v1091, 0.5
        %v1196 = vmul.f32 %v1093, 0.5
        %v1197 = vmul.f32 %v1095, 0.5
        %v1198 = vmul.f32 %v1097, 0.5
        %v1199 = vmul.f32 %v1101, 0.5
        %v1200 = vmul.f32 %v1103, 0.5
        %v1201 = vmul.f32 %v1105, 0.5
        %v1202 = vmul.f32 %v1107, 0.5
        %v1203 = vmul.f32 %v1111, 0.5
        %v1204 = vmul.f32 %v1113, 0.5
        %v1205 = vmul.f32 %v1115, 0.5
        %v1206 = vmul.f32 %v1117, 0.5
        %v1207 = vmul.f32 %v1121, 0.5
        %v1208 = vmul.f32 %v1123, 0.5
        %v1209 = vmul.f32 %v1125, 0.5
        %v1210 = vmul.f32 %v1127, 0.5
        %v1211 = vmul.f32 %v1131, 0.5
        %v1212 = vmul.f32 %v1133, 0.5
        %v1213 = vmul.f32 %v1135, 0.5
        %v1214 = vmul.f32 %v1137, 0.5
        %v1215 = vmul.f32 %v1141, 0.5
        %v1216 = vmul.f32 %v1143, 0.5
        %v1217 = vmul.f32 %v1145, 0.5
        %v1218 = vmul.f32 %v1147, 0.5
        %v1219 = vmul.f32 %v1151, 0.5
        %v1220 = vmul.f32 %v1153, 0.5
        %v1221 = vmul.f32 %v1155, 0.5
        %v1222 = vmul.f32 %v1157, 0.5
        %v1223 = vmul.f32 %v1001, 0.70710677
        %v1224 = vmul.f32 %v1003, 0.70710677
        %v1225 = vmul.f32 %v1005, 0.70710677
        %v1226 = vmul.f32 %v1007, 0.70710677
        %v1227 = vmul.f32 %v1011, 0.70710677
        %v1228 = vmul.f32 %v1013, 0.70710677
        %v1229 = vmul.f32 %v1015, 0.70710677
        %v1230 = vmul.f32 %v1017, 0.70710677
        %v1231 = vmul.f32 %v1021, 0.70710677
        %v1232 = vmul.f32 %v1023, 0.70710677
        %v1233 = vmul.f32 %v1025, 0.70710677
        %v1234 = vmul.f32 %v1027, 0.70710677
        %v1235 = vmul.f32 %v1031, 0.70710677
        %v1236 = vmul.f32 %v1033, 0.70710677
        %v1237 = vmul.f32 %v1035, 0.70710677
        %v1238 = vmul.f32 %v1037, 0.70710677
        %v1239 = vmul.f32 %v1041, 0.70710677
        %v1240 = vmul.f32 %v1043, 0.70710677
        %v1241 = vmul.f32 %v1045, 0.70710677
        %v1242 = vmul.f32 %v1047, 0.70710677
        %v1243 = vmul.f32 %v1051, 0.70710677
        %v1244 = vmul.f32 %v1053, 0.70710677
        %v1245 = vmul.f32 %v1055, 0.70710677
        %v1246 = vmul.f32 %v1057, 0.70710677
        %v1247 = vmul.f32 %v1061, 0.70710677
        %v1248 = vmul.f32 %v1063, 0.70710677
        %v1249 = vmul.f32 %v1065, 0.70710677
        %v1250 = vmul.f32 %v1067, 0.70710677
        %v1251 = vmul.f32 %v1071, 0.70710677
        %v1252 = vmul.f32 %v1073, 0.70710677
        %v1253 = vmul.f32 %v1075, 0.70710677
        %v1254 = vmul.f32 %v1077, 0.70710677
        %v1255 = vmul.f32 %v1081, 0.70710677
        %v1256 = vmul.f32 %v1083, 0.70710677
        %v1257 = vmul.f32 %v1085, 0.70710677
        %v1258 = vmul.f32 %v1087, 0.70710677
        %v1259 = vmul.f32 %v1091, 0.70710677
        %v1260 = vmul.f32 %v1093, 0.70710677
        %v1261 = vmul.f32 %v1095, 0.70710677
        %v1262 = vmul.f32 %v1097, 0.70710677
        %v1263 = vmul.f32 %v1101, 0.70710677
        %v1264 = vmul.f32 %v1103, 0.70710677
        %v1265 = vmul.f32 %v1105, 0.70710677
        %v1266 = vmul.f32 %v1107, 0.70710677
        %v1267 = vmul.f32 %v1111, 0.70710677
        %v1268 = vmul.f32 %v1113, 0.70710677
        %v1269 = vmul.f32 %v1115, 0.70710677
        %v1270 = vmul.f32 %v1117, 0.70710677
        %v1271 = vmul.f32 %v1121, 0.70710677
        %v1272 = vmul.f32 %v1123, 0.70710677
        %v1273 = vmul.f32 %v1125, 0.70710677
        %v1274 = vmul.f32 %v1127, 0.70710677
        %v1275 = vmul.f32 %v1131, 0.70710677
        %v1276 = vmul.f32 %v1133, 0.70710677
        %v1277 = vmul.f32 %v1135, 0.70710677
        %v1278 = vmul.f32 %v1137, 0.70710677
        %v1279 = vmul.f32 %v1141, 0.70710677
        %v1280 = vmul.f32 %v1143, 0.70710677
        %v1281 = vmul.f32 %v1145, 0.70710677
        %v1282 = vmul.f32 %v1147, 0.70710677
        %v1283 = vmul.f32 %v1151, 0.70710677
        %v1284 = vmul.f32 %v1153, 0.70710677
        %v1285 = vmul.f32 %v1155, 0.70710677
        %v1286 = vmul.f32 %v1157, 0.70710677
        %v1287 = verf.f32.pop %v1223
        %v1288 = verf.f32.pop %v1224
        %v1289 = verf.f32.pop %v1225
        %v1290 = verf.f32.pop %v1226
        %v1291 = verf.f32.pop %v1227
        %v1292 = verf.f32.pop %v1228
        %v1293 = verf.f32.pop %v1229
        %v1294 = verf.f32.pop %v1230
        %v1295 = verf.f32.pop %v1231
        %v1296 = verf.f32.pop %v1232
        %v1297 = verf.f32.pop %v1233
        %v1298 = verf.f32.pop %v1234
        %v1299 = verf.f32.pop %v1235
        %v1300 = verf.f32.pop %v1236
        %v1301 = verf.f32.pop %v1237
        %v1302 = verf.f32.pop %v1238
        %v1303 = verf.f32.pop %v1239
        %v1304 = verf.f32.pop %v1240
        %v1305 = verf.f32.pop %v1241
        %v1306 = verf.f32.pop %v1242
        %v1307 = verf.f32.pop %v1243
        %v1308 = verf.f32.pop %v1244
        %v1309 = verf.f32.pop %v1245
        %v1310 = verf.f32.pop %v1246
        %v1311 = verf.f32.pop %v1247
        %v1312 = verf.f32.pop %v1248
        %v1313 = verf.f32.pop %v1249
        %v1314 = verf.f32.pop %v1250
        %v1315 = verf.f32.pop %v1251
        %v1316 = verf.f32.pop %v1252
        %v1317 = verf.f32.pop %v1253
        %v1318 = verf.f32.pop %v1254
        %v1319 = verf.f32.pop %v1255
        %v1320 = verf.f32.pop %v1256
        %v1321 = verf.f32.pop %v1257
        %v1322 = verf.f32.pop %v1258
        %v1323 = verf.f32.pop %v1259
        %v1324 = verf.f32.pop %v1260
        %v1325 = verf.f32.pop %v1261
        %v1326 = verf.f32.pop %v1262
        %v1327 = verf.f32.pop %v1263
        %v1328 = verf.f32.pop %v1264
        %v1329 = verf.f32.pop %v1265
        %v1330 = verf.f32.pop %v1266
        %v1331 = verf.f32.pop %v1267
        %v1332 = verf.f32.pop %v1268
        %v1333 = verf.f32.pop %v1269
        %v1334 = verf.f32.pop %v1270
        %v1335 = verf.f32.pop %v1271
        %v1336 = verf.f32.pop %v1272
        %v1337 = verf.f32.pop %v1273
        %v1338 = verf.f32.pop %v1274
        %v1339 = verf.f32.pop %v1275
        %v1340 = verf.f32.pop %v1276
        %v1341 = verf.f32.pop %v1277
        %v1342 = verf.f32.pop %v1278
        %v1343 = verf.f32.pop %v1279
        %v1344 = verf.f32.pop %v1280
        %v1345 = verf.f32.pop %v1281
        %v1346 = verf.f32.pop %v1282
        %v1347 = verf.f32.pop %v1283
        %v1348 = verf.f32.pop %v1284
        %v1349 = verf.f32.pop %v1285
        %v1350 = verf.f32.pop %v1286
        %v1351 = vadd.f32 %v1287, 1.0
        %v1352 = vadd.f32 %v1288, 1.0
        %v1353 = vadd.f32 %v1289, 1.0
        %v1354 = vadd.f32 %v1290, 1.0
        %v1355 = vadd.f32 %v1291, 1.0
        %v1356 = vadd.f32 %v1292, 1.0
        %v1357 = vadd.f32 %v1293, 1.0
        %v1358 = vadd.f32 %v1294, 1.0
        %v1359 = vadd.f32 %v1295, 1.0
        %v1360 = vadd.f32 %v1296, 1.0
        %v1361 = vadd.f32 %v1297, 1.0
        %v1362 = vadd.f32 %v1298, 1.0
        %v1363 = vadd.f32 %v1299, 1.0
        %v1364 = vadd.f32 %v1300, 1.0
        %v1365 = vadd.f32 %v1301, 1.0
        %v1366 = vadd.f32 %v1302, 1.0
        %v1367 = vadd.f32 %v1303, 1.0
        %v1368 = vadd.f32 %v1304, 1.0
        %v1369 = vadd.f32 %v1305, 1.0
        %v1370 = vadd.f32 %v1306, 1.0
        %v1371 = vadd.f32 %v1307, 1.0
        %v1372 = vadd.f32 %v1308, 1.0
        %v1373 = vadd.f32 %v1309, 1.0
        %v1374 = vadd.f32 %v1310, 1.0
        %v1375 = vadd.f32 %v1311, 1.0
        %v1376 = vadd.f32 %v1312, 1.0
        %v1377 = vadd.f32 %v1313, 1.0
        %v1378 = vadd.f32 %v1314, 1.0
        %v1379 = vadd.f32 %v1315, 1.0
        %v1380 = vadd.f32 %v1316, 1.0
        %v1381 = vadd.f32 %v1317, 1.0
        %v1382 = vadd.f32 %v1318, 1.0
        %v1383 = vadd.f32 %v1319, 1.0
        %v1384 = vadd.f32 %v1320, 1.0
        %v1385 = vadd.f32 %v1321, 1.0
        %v1386 = vadd.f32 %v1322, 1.0
        %v1387 = vadd.f32 %v1323, 1.0
        %v1388 = vadd.f32 %v1324, 1.0
        %v1389 = vadd.f32 %v1325, 1.0
        %v1390 = vadd.f32 %v1326, 1.0
        %v1391 = vadd.f32 %v1327, 1.0
        %v1392 = vadd.f32 %v1328, 1.0
        %v1393 = vadd.f32 %v1329, 1.0
        %v1394 = vadd.f32 %v1330, 1.0
        %v1395 = vadd.f32 %v1331, 1.0
        %v1396 = vadd.f32 %v1332, 1.0
        %v1397 = vadd.f32 %v1333, 1.0
        %v1398 = vadd.f32 %v1334, 1.0
        %v1399 = vadd.f32 %v1335, 1.0
        %v1400 = vadd.f32 %v1336, 1.0
        %v1401 = vadd.f32 %v1337, 1.0
        %v1402 = vadd.f32 %v1338, 1.0
        %v1403 = vadd.f32 %v1339, 1.0
        %v1404 = vadd.f32 %v1340, 1.0
        %v1405 = vadd.f32 %v1341, 1.0
        %v1406 = vadd.f32 %v1342, 1.0
        %v1407 = vadd.f32 %v1343, 1.0
        %v1408 = vadd.f32 %v1344, 1.0
        %v1409 = vadd.f32 %v1345, 1.0
        %v1410 = vadd.f32 %v1346, 1.0
        %v1411 = vadd.f32 %v1347, 1.0
        %v1412 = vadd.f32 %v1348, 1.0
        %v1413 = vadd.f32 %v1349, 1.0
        %v1414 = vadd.f32 %v1350, 1.0
        %v1415 = vmul.f32 %v1159, %v1351
        %v1416 = vmul.f32 %v1160, %v1352
        %v1417 = vmul.f32 %v1161, %v1353
        %v1418 = vmul.f32 %v1162, %v1354
        %v1419 = vmul.f32 %v1163, %v1355
        %v1420 = vmul.f32 %v1164, %v1356
        %v1421 = vmul.f32 %v1165, %v1357
        %v1422 = vmul.f32 %v1166, %v1358
        %v1423 = vmul.f32 %v1167, %v1359
        %v1424 = vmul.f32 %v1168, %v1360
        %v1425 = vmul.f32 %v1169, %v1361
        %v1426 = vmul.f32 %v1170, %v1362
        %v1427 = vmul.f32 %v1171, %v1363
        %v1428 = vmul.f32 %v1172, %v1364
        %v1429 = vmul.f32 %v1173, %v1365
        %v1430 = vmul.f32 %v1174, %v1366
        %v1431 = vmul.f32 %v1175, %v1367
        %v1432 = vmul.f32 %v1176, %v1368
        %v1433 = vmul.f32 %v1177, %v1369
        %v1434 = vmul.f32 %v1178, %v1370
        %v1435 = vmul.f32 %v1179, %v1371
        %v1436 = vmul.f32 %v1180, %v1372
        %v1437 = vmul.f32 %v1181, %v1373
        %v1438 = vmul.f32 %v1182, %v1374
        %v1439 = vmul.f32 %v1183, %v1375
        %v1440 = vmul.f32 %v1184, %v1376
        %v1441 = vmul.f32 %v1185, %v1377
        %v1442 = vmul.f32 %v1186, %v1378
        %v1443 = vmul.f32 %v1187, %v1379
        %v1444 = vmul.f32 %v1188, %v1380
        %v1445 = vmul.f32 %v1189, %v1381
        %v1446 = vmul.f32 %v1190, %v1382
        %v1447 = vmul.f32 %v1191, %v1383
        %v1448 = vmul.f32 %v1192, %v1384
        %v1449 = vmul.f32 %v1193, %v1385
        %v1450 = vmul.f32 %v1194, %v1386
        %v1451 = vmul.f32 %v1195, %v1387
        %v1452 = vmul.f32 %v1196, %v1388
        %v1453 = vmul.f32 %v1197, %v1389
        %v1454 = vmul.f32 %v1198, %v1390
        %v1455 = vmul.f32 %v1199, %v1391
        %v1456 = vmul.f32 %v1200, %v1392
        %v1457 = vmul.f32 %v1201, %v1393
        %v1458 = vmul.f32 %v1202, %v1394
        %v1459 = vmul.f32 %v1203, %v1395
        %v1460 = vmul.f32 %v1204, %v1396
        %v1461 = vmul.f32 %v1205, %v1397
        %v1462 = vmul.f32 %v1206, %v1398
        %v1463 = vmul.f32 %v1207, %v1399
        %v1464 = vmul.f32 %v1208, %v1400
        %v1465 = vmul.f32 %v1209, %v1401
        %v1466 = vmul.f32 %v1210, %v1402
        %v1467 = vmul.f32 %v1211, %v1403
        %v1468 = vmul.f32 %v1212, %v1404
        %v1469 = vmul.f32 %v1213, %v1405
        %v1470 = vmul.f32 %v1214, %v1406
        %v1471 = vmul.f32 %v1215, %v1407
        %v1472 = vmul.f32 %v1216, %v1408
        %v1473 = vmul.f32 %v1217, %v1409
        %v1474 = vmul.f32 %v1218, %v1410
        %v1475 = vmul.f32 %v1219, %v1411
        %v1476 = vmul.f32 %v1220, %v1412
        %v1477 = vmul.f32 %v1221, %v1413
        %v1478 = vmul.f32 %v1222, %v1414
        %v1479 = vpack.c.bf16 %v1417, %v1415
        %v1480 = vpack.c.bf16 %v1418, %v1416
        %v1481 = vpack.c.bf16 %v1421, %v1419
        %v1482 = vpack.c.bf16 %v1422, %v1420
        %v1483 = vpack.c.bf16 %v1425, %v1423
        %v1484 = vpack.c.bf16 %v1426, %v1424
        %v1485 = vpack.c.bf16 %v1429, %v1427
        %v1486 = vpack.c.bf16 %v1430, %v1428
        %v1487 = vpack.c.bf16 %v1433, %v1431
        %v1488 = vpack.c.bf16 %v1434, %v1432
        %v1489 = vpack.c.bf16 %v1437, %v1435
        %v1490 = vpack.c.bf16 %v1438, %v1436
        %v1491 = vpack.c.bf16 %v1441, %v1439
        %v1492 = vpack.c.bf16 %v1442, %v1440
        %v1493 = vpack.c.bf16 %v1445, %v1443
        %v1494 = vpack.c.bf16 %v1446, %v1444
        %v1495 = vpack.c.bf16 %v1449, %v1447
        %v1496 = vpack.c.bf16 %v1450, %v1448
        %v1497 = vpack.c.bf16 %v1453, %v1451
        %v1498 = vpack.c.bf16 %v1454, %v1452
        %v1499 = vpack.c.bf16 %v1457, %v1455
        %v1500 = vpack.c.bf16 %v1458, %v1456
        %v1501 = vpack.c.bf16 %v1461, %v1459
        %v1502 = vpack.c.bf16 %v1462, %v1460
        %v1503 = vpack.c.bf16 %v1465, %v1463
        %v1504 = vpack.c.bf16 %v1466, %v1464
        %v1505 = vpack.c.bf16 %v1469, %v1467
        %v1506 = vpack.c.bf16 %v1470, %v1468
        %v1507 = vpack.c.bf16 %v1473, %v1471
        %v1508 = vpack.c.bf16 %v1474, %v1472
        %v1509 = vpack.c.bf16 %v1477, %v1475
        %v1510 = vpack.c.bf16 %v1478, %v1476
        %v1511 = vld [vmem:[#allocation11] sm:$0xf]
        %v1512 = vld [vmem:[#allocation11 + $0x4] sm:$0xf]
        %v1513 = vld [vmem:[#allocation11 + $0x8] sm:$0xf]
        %v1514 = vld [vmem:[#allocation11 + $0xc] sm:$0xf]
        %v1515 = vld [vmem:[#allocation11 + $0x10] sm:$0xf]
        %v1516 = vld [vmem:[#allocation11 + $0x14] sm:$0xf]
        %v1517 = vld [vmem:[#allocation11 + $0x18] sm:$0xf]
        %v1518 = vld [vmem:[#allocation11 + $0x1c] sm:$0xf]
        %v1519 = vld [vmem:[#allocation11 + $0x20] sm:$0xf]
        %v1520 = vld [vmem:[#allocation11 + $0x24] sm:$0xf]
        %v1521 = vld [vmem:[#allocation11 + $0x28] sm:$0xf]
        %v1522 = vld [vmem:[#allocation11 + $0x2c] sm:$0xf]
        %v1523 = vld [vmem:[#allocation11 + $0x30] sm:$0xf]
        %v1524 = vld [vmem:[#allocation11 + $0x34] sm:$0xf]
        %v1525 = vld [vmem:[#allocation11 + $0x38] sm:$0xf]
        %v1526 = vld [vmem:[#allocation11 + $0x3c] sm:$0xf]
        %v1527 = vld [vmem:[#allocation11 + $0x40] sm:$0xf]
        %v1528 = vld [vmem:[#allocation11 + $0x44] sm:$0xf]
        %v1529 = vld [vmem:[#allocation11 + $0x48] sm:$0xf]
        %v1530 = vld [vmem:[#allocation11 + $0x4c] sm:$0xf]
        %v1531 = vld [vmem:[#allocation11 + $0x50] sm:$0xf]
        %v1532 = vld [vmem:[#allocation11 + $0x54] sm:$0xf]
        %v1533 = vld [vmem:[#allocation11 + $0x58] sm:$0xf]
        %v1534 = vld [vmem:[#allocation11 + $0x5c] sm:$0xf]
        %v1535 = vld [vmem:[#allocation11 + $0x60] sm:$0xf]
        %v1536 = vld [vmem:[#allocation11 + $0x64] sm:$0xf]
        %v1537 = vld [vmem:[#allocation11 + $0x68] sm:$0xf]
        %v1538 = vld [vmem:[#allocation11 + $0x6c] sm:$0xf]
        %v1539 = vld [vmem:[#allocation11 + $0x70] sm:$0xf]
        %v1540 = vld [vmem:[#allocation11 + $0x74] sm:$0xf]
        %v1541 = vld [vmem:[#allocation11 + $0x78] sm:$0xf]
        %v1542 = vld [vmem:[#allocation11 + $0x7c] sm:$0xf]
        %v1543 = vld [vmem:[#allocation13] sm:$0x1]
        %v1545 = vlaneseq
        %v1546 = vshrl.u32 %v1545, 7
        %v1547 = vsub.s32 0, %v1546
        %v1548 = vrot.slane %v1543, %v1547
        %v1582 = vunpack.c.l.b16 %v1511
        %v1583 = vunpack.c.l.b16 %v1512
        %v1584 = vunpack.c.l.b16 %v1513
        %v1585 = vunpack.c.l.b16 %v1514
        %v1586 = vunpack.c.l.b16 %v1515
        %v1587 = vunpack.c.l.b16 %v1516
        %v1588 = vunpack.c.l.b16 %v1517
        %v1589 = vunpack.c.l.b16 %v1518
        %v1590 = vunpack.c.l.b16 %v1519
        %v1591 = vunpack.c.l.b16 %v1520
        %v1592 = vunpack.c.l.b16 %v1521
        %v1593 = vunpack.c.l.b16 %v1522
        %v1594 = vunpack.c.l.b16 %v1523
        %v1595 = vunpack.c.l.b16 %v1524
        %v1596 = vunpack.c.l.b16 %v1525
        %v1597 = vunpack.c.l.b16 %v1526
        %v1598 = vunpack.c.l.b16 %v1527
        %v1599 = vunpack.c.l.b16 %v1528
        %v1600 = vunpack.c.l.b16 %v1529
        %v1601 = vunpack.c.l.b16 %v1530
        %v1602 = vunpack.c.l.b16 %v1531
        %v1603 = vunpack.c.l.b16 %v1532
        %v1604 = vunpack.c.l.b16 %v1533
        %v1605 = vunpack.c.l.b16 %v1534
        %v1606 = vunpack.c.l.b16 %v1535
        %v1607 = vunpack.c.l.b16 %v1536
        %v1608 = vunpack.c.l.b16 %v1537
        %v1609 = vunpack.c.l.b16 %v1538
        %v1610 = vunpack.c.l.b16 %v1539
        %v1611 = vunpack.c.l.b16 %v1540
        %v1612 = vunpack.c.l.b16 %v1541
        %v1613 = vunpack.c.l.b16 %v1542
        %v1614 = vpack.c.b16 %v1583, %v1582
        %v1615 = vpack.c.b16 %v1585, %v1584
        %v1616 = vpack.c.b16 %v1587, %v1586
        %v1617 = vpack.c.b16 %v1589, %v1588
        %v1618 = vpack.c.b16 %v1591, %v1590
        %v1619 = vpack.c.b16 %v1593, %v1592
        %v1620 = vpack.c.b16 %v1595, %v1594
        %v1621 = vpack.c.b16 %v1597, %v1596
        %v1622 = vpack.c.b16 %v1599, %v1598
        %v1623 = vpack.c.b16 %v1601, %v1600
        %v1624 = vpack.c.b16 %v1603, %v1602
        %v1625 = vpack.c.b16 %v1605, %v1604
        %v1626 = vpack.c.b16 %v1607, %v1606
        %v1627 = vpack.c.b16 %v1609, %v1608
        %v1628 = vpack.c.b16 %v1611, %v1610
        %v1629 = vpack.c.b16 %v1613, %v1612
        %1646 = vmatprep.subr.bf16.mxu0 0
        %1647 = vmatpush1.bf16.msra.mxu0 %v1614
        %1648 = vmatprep.subr.bf16.mxu0 0
        %1649 = vmatpush1.bf16.msra.mxu0 %v1615
        %1650 = vmatprep.subr.bf16.mxu0 0
        %1651 = vmatpush1.bf16.msra.mxu0 %v1616
        %1652 = vmatprep.subr.bf16.mxu0 0
        %1653 = vmatpush1.bf16.msra.mxu0 %v1617
        %1654 = vmatprep.subr.bf16.mxu0 0
        %1655 = vmatpush1.bf16.msra.mxu0 %v1618
        %1656 = vmatprep.subr.bf16.mxu0 0
        %1657 = vmatpush1.bf16.msra.mxu0 %v1619
        %1658 = vmatprep.subr.bf16.mxu0 0
        %1659 = vmatpush1.bf16.msra.mxu0 %v1620
        %1660 = vmatprep.subr.bf16.mxu0 0
        %1661 = vmatpush1.bf16.msra.mxu0 %v1621
        %1662 = vmatprep.subr.bf16.mxu0 0
        %1663 = vmatpush1.bf16.msra.mxu0 %v1622
        %1664 = vmatprep.subr.bf16.mxu0 0
        %1665 = vmatpush1.bf16.msra.mxu0 %v1623
        %1666 = vmatprep.subr.bf16.mxu0 0
        %1667 = vmatpush1.bf16.msra.mxu0 %v1624
        %1668 = vmatprep.subr.bf16.mxu0 0
        %1669 = vmatpush1.bf16.msra.mxu0 %v1625
        %1670 = vmatprep.subr.bf16.mxu0 0
        %1671 = vmatpush1.bf16.msra.mxu0 %v1626
        %1672 = vmatprep.subr.bf16.mxu0 0
        %1673 = vmatpush1.bf16.msra.mxu0 %v1627
        %1674 = vmatprep.subr.bf16.mxu0 0
        %1675 = vmatpush1.bf16.msra.mxu0 %v1628
        %1676 = vmatprep.subr.bf16.mxu0 0
        %1677 = vmatpush1.bf16.msra.mxu0 %v1629
        %1678 = vmatprep.mubr.bf16.mxu0 %v1480
        %1679 = vmatmul.mubr.bf16.gmra.mrb[0].mxu0 %v1479
        %v1680 = vpop.f32.mrb[0].mxu0
        %v1681 = vadd.f32 %v1548, %v1680
        %v1682 = vpop.f32.mrb[0].mxu0
        %v1683 = vpop.f32.mrb[0].mxu0
        %v1684 = vadd.f32 %v1548, %v1683
        %v1685 = vpop.f32.mrb[0].mxu0
        %1686 = vmatprep.mubr.bf16.mxu0 %v1482
        %1687 = vmatmul.mubr.bf16.gmra.mrb[0].mxu0 %v1481
        %v1688 = vpop.f32.mrb[0].mxu0
        %v1689 = vadd.f32 %v1548, %v1688
        %v1690 = vpop.f32.mrb[0].mxu0
        %v1691 = vpop.f32.mrb[0].mxu0
        %v1692 = vadd.f32 %v1548, %v1691
        %v1693 = vpop.f32.mrb[0].mxu0
        %1694 = vmatprep.mubr.bf16.mxu0 %v1484
        %1695 = vmatmul.mubr.bf16.gmra.mrb[0].mxu0 %v1483
        %v1696 = vpop.f32.mrb[0].mxu0
        %v1697 = vadd.f32 %v1548, %v1696
        %v1698 = vpop.f32.mrb[0].mxu0
        %v1699 = vpop.f32.mrb[0].mxu0
        %v1700 = vadd.f32 %v1548, %v1699
        %v1701 = vpop.f32.mrb[0].mxu0
        %1702 = vmatprep.mubr.bf16.mxu0 %v1486
        %1703 = vmatmul.mubr.bf16.gmra.mrb[0].mxu0 %v1485
        %v1704 = vpop.f32.mrb[0].mxu0
        %v1705 = vadd.f32 %v1548, %v1704
        %v1706 = vpop.f32.mrb[0].mxu0
        %v1707 = vpop.f32.mrb[0].mxu0
        %v1708 = vadd.f32 %v1548, %v1707
        %v1709 = vpop.f32.mrb[0].mxu0
        %1710 = vmatprep.mubr.bf16.mxu0 %v1488
        %1711 = vmatmul.mubr.bf16.gmra.mrb[0].mxu0 %v1487
        %v1712 = vpop.f32.mrb[0].mxu0
        %v1713 = vadd.f32 %v1548, %v1712
        %v1714 = vpop.f32.mrb[0].mxu0
        %v1715 = vpop.f32.mrb[0].mxu0
        %v1716 = vadd.f32 %v1548, %v1715
        %v1717 = vpop.f32.mrb[0].mxu0
        %1718 = vmatprep.mubr.bf16.mxu0 %v1490
        %1719 = vmatmul.mubr.bf16.gmra.mrb[0].mxu0 %v1489
        %v1720 = vpop.f32.mrb[0].mxu0
        %v1721 = vadd.f32 %v1548, %v1720
        %v1722 = vpop.f32.mrb[0].mxu0
        %v1723 = vpop.f32.mrb[0].mxu0
        %v1724 = vadd.f32 %v1548, %v1723
        %v1725 = vpop.f32.mrb[0].mxu0
        %1726 = vmatprep.mubr.bf16.mxu0 %v1492
        %1727 = vmatmul.mubr.bf16.gmra.mrb[0].mxu0 %v1491
        %v1728 = vpop.f32.mrb[0].mxu0
        %v1729 = vadd.f32 %v1548, %v1728
        %v1730 = vpop.f32.mrb[0].mxu0
        %v1731 = vpop.f32.mrb[0].mxu0
        %v1732 = vadd.f32 %v1548, %v1731
        %v1733 = vpop.f32.mrb[0].mxu0
        %1734 = vmatprep.mubr.bf16.mxu0 %v1494
        %1735 = vmatmul.mubr.bf16.gmra.mrb[0].mxu0 %v1493
        %v1736 = vpop.f32.mrb[0].mxu0
        %v1737 = vadd.f32 %v1548, %v1736
        %v1738 = vpop.f32.mrb[0].mxu0
        %v1739 = vpop.f32.mrb[0].mxu0
        %v1740 = vadd.f32 %v1548, %v1739
        %v1741 = vpop.f32.mrb[0].mxu0
        %1742 = vmatprep.mubr.bf16.mxu0 %v1496
        %1743 = vmatmul.mubr.bf16.gmra.mrb[0].mxu0 %v1495
        %v1744 = vpop.f32.mrb[0].mxu0
        %v1745 = vadd.f32 %v1548, %v1744
        %v1746 = vpop.f32.mrb[0].mxu0
        %v1747 = vpop.f32.mrb[0].mxu0
        %v1748 = vadd.f32 %v1548, %v1747
        %v1749 = vpop.f32.mrb[0].mxu0
        %1750 = vmatprep.mubr.bf16.mxu0 %v1498
        %1751 = vmatmul.mubr.bf16.gmra.mrb[0].mxu0 %v1497
        %v1752 = vpop.f32.mrb[0].mxu0
        %v1753 = vadd.f32 %v1548, %v1752
        %v1754 = vpop.f32.mrb[0].mxu0
        %v1755 = vpop.f32.mrb[0].mxu0
        %v1756 = vadd.f32 %v1548, %v1755
        %v1757 = vpop.f32.mrb[0].mxu0
        %1758 = vmatprep.mubr.bf16.mxu0 %v1500
        %1759 = vmatmul.mubr.bf16.gmra.mrb[0].mxu0 %v1499
        %v1760 = vpop.f32.mrb[0].mxu0
        %v1761 = vadd.f32 %v1548, %v1760
        %v1762 = vpop.f32.mrb[0].mxu0
        %v1763 = vpop.f32.mrb[0].mxu0
        %v1764 = vadd.f32 %v1548, %v1763
        %v1765 = vpop.f32.mrb[0].mxu0
        %1766 = vmatprep.mubr.bf16.mxu0 %v1502
        %1767 = vmatmul.mubr.bf16.gmra.mrb[0].mxu0 %v1501
        %v1768 = vpop.f32.mrb[0].mxu0
        %v1769 = vadd.f32 %v1548, %v1768
        %v1770 = vpop.f32.mrb[0].mxu0
        %v1771 = vpop.f32.mrb[0].mxu0
        %v1772 = vadd.f32 %v1548, %v1771
        %v1773 = vpop.f32.mrb[0].mxu0
        %1774 = vmatprep.mubr.bf16.mxu0 %v1504
        %1775 = vmatmul.mubr.bf16.gmra.mrb[0].mxu0 %v1503
        %v1776 = vpop.f32.mrb[0].mxu0
        %v1777 = vadd.f32 %v1548, %v1776
        %v1778 = vpop.f32.mrb[0].mxu0
        %v1779 = vpop.f32.mrb[0].mxu0
        %v1780 = vadd.f32 %v1548, %v1779
        %v1781 = vpop.f32.mrb[0].mxu0
        %1782 = vmatprep.mubr.bf16.mxu0 %v1506
        %1783 = vmatmul.mubr.bf16.gmra.mrb[0].mxu0 %v1505
        %v1784 = vpop.f32.mrb[0].mxu0
        %v1785 = vadd.f32 %v1548, %v1784
        %v1786 = vpop.f32.mrb[0].mxu0
        %v1787 = vpop.f32.mrb[0].mxu0
        %v1788 = vadd.f32 %v1548, %v1787
        %v1789 = vpop.f32.mrb[0].mxu0
        %1790 = vmatprep.mubr.bf16.mxu0 %v1508
        %1791 = vmatmul.mubr.bf16.gmra.mrb[0].mxu0 %v1507
        %v1792 = vpop.f32.mrb[0].mxu0
        %v1793 = vadd.f32 %v1548, %v1792
        %v1794 = vpop.f32.mrb[0].mxu0
        %v1795 = vpop.f32.mrb[0].mxu0
        %v1796 = vadd.f32 %v1548, %v1795
        %v1797 = vpop.f32.mrb[0].mxu0
        %1798 = vmatprep.mubr.bf16.mxu0 %v1510
        %1799 = vmatmul.mubr.bf16.gmra.mrb[0].mxu0 %v1509
        %v1800 = vpop.f32.mrb[0].mxu0
        %v1801 = vadd.f32 %v1548, %v1800
        %v1802 = vpop.f32.mrb[0].mxu0
        %v1803 = vpop.f32.mrb[0].mxu0
        %v1804 = vadd.f32 %v1548, %v1803
        %v1805 = vpop.f32.mrb[0].mxu0
        %1806 = vdwg.mxu0
        %v1807 = vadd.f32 %v379, %v1681
        %v1808 = vadd.f32 %v380, %v1684
        %v1809 = vadd.f32 %v381, %v1689
        %v1810 = vadd.f32 %v382, %v1692
        %v1811 = vadd.f32 %v383, %v1697
        %v1812 = vadd.f32 %v384, %v1700
        %v1813 = vadd.f32 %v385, %v1705
        %v1814 = vadd.f32 %v386, %v1708
        %v1815 = vadd.f32 %v387, %v1713
        %v1816 = vadd.f32 %v388, %v1716
        %v1817 = vadd.f32 %v389, %v1721
        %v1818 = vadd.f32 %v390, %v1724
        %v1819 = vadd.f32 %v391, %v1729
        %v1820 = vadd.f32 %v392, %v1732
        %v1821 = vadd.f32 %v393, %v1737
        %v1822 = vadd.f32 %v394, %v1740
        %v1823 = vadd.f32 %v395, %v1745
        %v1824 = vadd.f32 %v396, %v1748
        %v1825 = vadd.f32 %v397, %v1753
        %v1826 = vadd.f32 %v398, %v1756
        %v1827 = vadd.f32 %v399, %v1761
        %v1828 = vadd.f32 %v400, %v1764
        %v1829 = vadd.f32 %v401, %v1769
        %v1830 = vadd.f32 %v402, %v1772
        %v1831 = vadd.f32 %v403, %v1777
        %v1832 = vadd.f32 %v404, %v1780
        %v1833 = vadd.f32 %v405, %v1785
        %v1834 = vadd.f32 %v406, %v1788
        %v1835 = vadd.f32 %v407, %v1793
        %v1836 = vadd.f32 %v408, %v1796
        %v1837 = vadd.f32 %v409, %v1801
        %v1838 = vadd.f32 %v410, %v1804
        %1839 = vst [vmem:[%s375] sm:$0xff] %v1807
        %1840 = vst [vmem:[%s375 + $0x8] sm:$0xff] %v1808
        %1841 = vst [vmem:[%s375 + $0x10] sm:$0xff] %v1809
        %1842 = vst [vmem:[%s375 + $0x18] sm:$0xff] %v1810
        %1843 = vst [vmem:[%s375 + $0x20] sm:$0xff] %v1811
        %1844 = vst [vmem:[%s375 + $0x28] sm:$0xff] %v1812
        %1845 = vst [vmem:[%s375 + $0x30] sm:$0xff] %v1813
        %1846 = vst [vmem:[%s375 + $0x38] sm:$0xff] %v1814
        %1847 = vst [vmem:[%s375 + $0x40] sm:$0xff] %v1815
        %1848 = vst [vmem:[%s375 + $0x48] sm:$0xff] %v1816
        %1849 = vst [vmem:[%s375 + $0x50] sm:$0xff] %v1817
        %1850 = vst [vmem:[%s375 + $0x58] sm:$0xff] %v1818
        %1851 = vst [vmem:[%s375 + $0x60] sm:$0xff] %v1819
        %1852 = vst [vmem:[%s375 + $0x68] sm:$0xff] %v1820
        %1853 = vst [vmem:[%s375 + $0x70] sm:$0xff] %v1821
        %1854 = vst [vmem:[%s375 + $0x78] sm:$0xff] %v1822
        %1855 = vst [vmem:[%s375 + $0x80] sm:$0xff] %v1823
        %1856 = vst [vmem:[%s375 + $0x88] sm:$0xff] %v1824
        %1857 = vst [vmem:[%s375 + $0x90] sm:$0xff] %v1825
        %1858 = vst [vmem:[%s375 + $0x98] sm:$0xff] %v1826
        %1859 = vst [vmem:[%s375 + $0xa0] sm:$0xff] %v1827
        %1860 = vst [vmem:[%s375 + $0xa8] sm:$0xff] %v1828
        %1861 = vst [vmem:[%s375 + $0xb0] sm:$0xff] %v1829
        %1862 = vst [vmem:[%s375 + $0xb8] sm:$0xff] %v1830
        %1863 = vst [vmem:[%s375 + $0xc0] sm:$0xff] %v1831
        %1864 = vst [vmem:[%s375 + $0xc8] sm:$0xff] %v1832
        %1865 = vst [vmem:[%s375 + $0xd0] sm:$0xff] %v1833
        %1866 = vst [vmem:[%s375 + $0xd8] sm:$0xff] %v1834
        %1867 = vst [vmem:[%s375 + $0xe0] sm:$0xff] %v1835
        %1868 = vst [vmem:[%s375 + $0xe8] sm:$0xff] %v1836
        %1869 = vst [vmem:[%s375 + $0xf0] sm:$0xff] %v1837
        %1870 = vst [vmem:[%s375 + $0xf8] sm:$0xff] %v1838
        %s1871 = sand.u32 %s187, 1
        %s1872 = scalar_lea.sflag [#allocation4], %s1871
        %s1873 = sand.u32 %s187, 1
        %s1874 = smul.addr %s1873, 256
        %s1875 = scalar_lea.vmem [#allocation14], %s1874
        // Predicated region
        $region77: #{tpu_custom_call.1} parent=47 // pred_check
          %p1876 = pneg %p197
        $region78: #{tpu_custom_call.1} parent=47 // pred_check_branch
          %1878 = sbr.rel (%p1876) target = $region80
        $region79: #{tpu_custom_call.1} parent=47 // pred_region
          %s1879 = smul.u32 32, %s27
          %s1881 = ssub.s32 4096, 4096
          %1882 = vsyncadd %s1872, %s1881
          %s1883 = smul.addr %s1879, 128
          %s1884 = scalar_lea.hbm %s7, %s1883
          %s1885 = sshll.u32 %s1875, 4
          %s1886 = int_to_ptr.vmem [resolvable:$true] %s1885
          %1891 = dma.vmem_to_hbm [thread:$0]  %s1886, 4096, %s1884, %s1872, 128, 128, 8
        $region80: #{tpu_custom_call.1} parent=47 // pred_fallthru
          _
      $region48: #{tpu_custom_call.1} parent=5 // pred_fallthru
        _
      %p1892 = scmp.le.s32.totalorder 2, %s22
      // Predicated region
      $region81: #{tpu_custom_call.1} parent=5 // pred_check
        %p1893 = pneg %p1892
      $region82: #{tpu_custom_call.1} parent=5 // pred_check_branch
        %1895 = sbr.rel (%p1893) target = $region84
      $region83: #{tpu_custom_call.1} parent=5 // pred_region
        %s1896 = ssub.s32 %s22, 2
        // Predicated region
        $region85: #{tpu_custom_call.1} parent=83 // pred_check
          %p1897 = pneg %p203
        $region86: #{tpu_custom_call.1} parent=83 // pred_check_branch
          %1899 = sbr.rel (%p1897) target = $region88
        $region87: #{tpu_custom_call.1} parent=83 // pred_region
          %s1900 = sand.u32 %s188, 1
          %s1901 = scalar_lea.sflag [#allocation4], %s1900
          %s1902 = sand.u32 %s188, 1
          %s1903 = smul.addr %s1902, 256
          %s1904 = scalar_lea.vmem [#allocation14], %s1903
          %1905 = dma.done %s1901, 4096
        $region88: #{tpu_custom_call.1} parent=83 // pred_fallthru
          _
      $region84: #{tpu_custom_call.1} parent=5 // pred_fallthru
        _
    $region6: #{tpu_custom_call.1} parent=1 // loop_footer
      %s26 = sadd.s32 1, %s22
    $region7: #{tpu_custom_call.1} parent=1 // loop_footer_branch
      %21 = sbr.rel target = $region3
    $region8: #{tpu_custom_call.1} parent=1 // loop_exit
      _
    %1906 = vsyncpa [#allocation3], 1
    %s1907 = scalar_lea.sflag [#allocation3], 1
    %1908 = vsyncpa %s1907, 1
    %1909 = vsyncpa [#allocation6], 1
    %1910 = vsyncpa [#allocation9], 1
    %1911 = vsyncpa [#allocation12], 1
    %1912 = vsyncpa [#allocation4], 1
    %s1913 = scalar_lea.sflag [#allocation4], 1
    %1914 = vsyncpa %s1913, 1

</llo_original>
